<compile_context>
chip_gen: v6e
topology: v6e:2x2x1
jax: 0.10.0
libtpu: 0.0.40
codegen_flags: <defaults>
</compile_context>

<pallas_src>
import functools

import jax
import jax.numpy as jnp
from jax.experimental import pallas as pl
from jax.experimental.pallas import tpu as pltpu

MASK_CHANNELS = 150   # extractor == 'segformer'
PATCH = 4             # SegFormer-style 1/4-resolution feature map
M_FEAT = 152          # 150 feature channels padded to a sublane multiple of 8


# ----------------------------------------------------------------------------
# Fused kernel: one (batch, row-tile) grid step.
# ----------------------------------------------------------------------------
def _fused_kernel(pt_ref, wall_ref, bf_ref, wuf_ref, bu_ref, erep_ref, eup_ref,
                  o_ref, acc_ref, *, th_p, n_kp):
    """Refs (per grid step):
      pt_ref  : (1, 1, 16C, th_p*Wp) bf16  channel-major im2col patches
      wall_ref: (152+16*n_kp, 16C)   bf16  [patch-embed rows ; raw-pixel rows]
      bf_ref  : (152, 1)             f32   patch-embed bias (padded)
      wuf_ref : (n_kp, 152)          bf16  1x1-conv weight, feature part
      bu_ref  : (n_kp, 1)            f32   1x1-conv bias
      erep_ref: (cw, 4cw)            bf16  nearest-x4 replication tile
      eup_ref : (4, cw, 4cw)         bf16  per-phase placement tiles
      o_ref   : (1, n_kp, 4*th_p, W) out   logits slab (NCHW, lane-dense on W)
      acc_ref : (th_p, 4*n_kp, W)    f32   VMEM scratch for aligned stores
    """
    cw = erep_ref.shape[0]
    w_out = o_ref.shape[3]
    wp = w_out // PATCH
    g = PATCH * n_kp                      # rows per dw-group: (n, dh) ordered
    n_chunks = wp // cw

    pt = pt_ref[0, 0]                                            # (16C, N) bf16
    e_rep = erep_ref[...]
    bu = bu_ref[...]

    # --- one batched GEMM over the whole row tile ---------------------------
    # rows [0:152)            : patch-embed (feature extractor)
    # rows [152:152+16*n_kp)  : raw-pixel term of the fused 1x1 conv
    allm = jnp.dot(wall_ref[...], pt, preferred_element_type=jnp.float32)
    feat = jnp.maximum(allm[:M_FEAT] + bf_ref[...], 0.0)         # (152, N) f32
    xt = allm[M_FEAT:].astype(jnp.bfloat16)                      # (16nkp, N)

    # --- fused 1x1-conv head (feature part), still at 1/4 resolution --------
    hf = jnp.dot(wuf_ref[...], feat.astype(jnp.bfloat16),
                 preferred_element_type=jnp.float32)             # (n_kp, N) f32
    hf16 = hf.astype(jnp.bfloat16)

    # --- epilogue: O(W) nearest-x4 upsample + phase-correct raw-pixel add ---
    for j in range(th_p):
        base = j * wp
        head_parts, x_parts = [], []
        for q in range(n_chunks):
            c0 = base + q * cw
            # head: replicate each 1/4-res column 4x along W
            head_parts.append(
                jnp.dot(hf16[:, c0:c0 + cw], e_rep,
                        preferred_element_type=jnp.float32))
            # raw-pixel term: each dw phase lands on lanes w == 4*wp + dw
            xq = jnp.dot(xt[0:g, c0:c0 + cw], eup_ref[0],
                         preferred_element_type=jnp.float32)
            for dw in range(1, PATCH):
                xq = xq + jnp.dot(xt[dw * g:(dw + 1) * g, c0:c0 + cw],
                                  eup_ref[dw],
                                  preferred_element_type=jnp.float32)
            x_parts.append(xq)
        head = head_parts[0] if n_chunks == 1 else jnp.concatenate(head_parts, axis=1)
        xful = x_parts[0] if n_chunks == 1 else jnp.concatenate(x_parts, axis=1)
        head = head + bu                                          # (n_kp, W) f32
        out_j = (jnp.broadcast_to(head[:, None, :], (n_kp, PATCH, w_out))
                 .reshape(g, w_out) + xful)                       # rows (n, dh)
        acc_ref[j] = out_j

    # --- dense, 8-row-aligned stores of each keypoint plane -----------------
    for n in range(n_kp):
        plane = acc_ref[:, PATCH * n:PATCH * (n + 1), :]          # (th_p, 4, W)
        o_ref[0, n] = plane.reshape(PATCH * th_p, w_out).astype(o_ref.dtype)


# ----------------------------------------------------------------------------
# Generation-aware VMEM budgeting and row-tile selection
# ----------------------------------------------------------------------------
def _vmem_params():
    kind = ""
    try:
        kind = jax.devices()[0].device_kind.lower()
    except Exception:
        pass
    if "v7" in kind:                      # 64 MiB VMEM per TensorCore
        return 22 << 20, 32 << 20
    if "v5" in kind or "v6" in kind:      # 128 MiB physical: big tiles / DMAs
        return 48 << 20, 64 << 20
    return 12 << 20, 32 << 20             # unknown: stay conservative


def _pick_row_tile(batch, hp, wp, c, n_kp, out_bytes, cw, budget_bytes):
    """th_p divides Hp; 4*th_p is a multiple of 8 unless th_p == Hp."""
    w = PATCH * wp
    k = PATCH * PATCH * c
    m_all = M_FEAT + PATCH * PATCH * n_kp

    def vmem_bytes(t):
        n = t * wp
        th = PATCH * t
        blocks = 2 * (k * n * 2 + n_kp * th * w * out_bytes)   # double-buffered I/O
        scratch = t * PATCH * n_kp * w * 4
        weights = 4 * (m_all * k + n_kp * M_FEAT + 5 * cw * PATCH * cw) \
            + 4 * (M_FEAT + n_kp)
        temps = (m_all * n * 4 + M_FEAT * n * 6
                 + PATCH * PATCH * n_kp * n * 2 + n_kp * n * 6
                 + 10 * n_kp * w * 4)
        return blocks + scratch + weights + temps

    cands = [t for t in range(1, hp + 1)
             if hp % t == 0 and (t % 2 == 0 or t == hp)]
    best, best_key = cands[0], None
    for t in cands:
        steps = batch * (hp // t)
        key = (vmem_bytes(t) <= budget_bytes, steps >= 2, steps % 2 == 0, t)
        if best_key is None or key > best_key:
            best, best_key = t, key
    if not best_key[0]:                   # nothing fits the budget: smallest tile
        best = cands[0]
    return best


# ----------------------------------------------------------------------------
# Parameters + forward
# ----------------------------------------------------------------------------
def init_params(orig_channels, num_keypoints, key=jax.random.PRNGKey(0)):
    k1, k2, k3, k4 = jax.random.split(key, 4)
    # Patch-embed "feature extractor": 4x4 / stride-4 conv, C -> 150.
    # K rows are ordered (c, dh, dw).
    k_in = PATCH * PATCH * orig_channels
    w_feat = 0.05 * jax.random.normal(k1, (k_in, MASK_CHANNELS), jnp.float32)
    b_feat = 0.01 * jax.random.normal(k2, (MASK_CHANNELS,), jnp.float32)
    # SimpleUpsampler fusion head: 1x1 conv, (150 + C) -> num_keypoints.
    c_cat = MASK_CHANNELS + orig_channels
    w_up = 0.05 * jax.random.normal(k3, (c_cat, num_keypoints), jnp.float32)
    b_up = 0.01 * jax.random.normal(k4, (num_keypoints,), jnp.float32)
    return dict(w_feat=w_feat, b_feat=b_feat, w_up=w_up, b_up=b_up)


def composed_model_forward(params, x_nchw, out_dtype=jnp.float32):
    """x_nchw: (B, C, H, W) float -> logits (B, num_keypoints, H, W)."""
    B, C, H, W = x_nchw.shape
    assert H % PATCH == 0 and W % PATCH == 0
    Hp, Wp = H // PATCH, W // PATCH
    n_kp = params["w_up"].shape[1]
    K = PATCH * PATCH * C
    out_bytes = jnp.dtype(out_dtype).itemsize

    budget, vmem_limit = _vmem_params()
    # chunk width for the O(W) lane expansion (largest divisor of Wp <= 128)
    cw = max(d for d in range(1, min(Wp, 128) + 1) if Wp % d == 0)
    th_p = _pick_row_tile(B, Hp, Wp, C, n_kp, out_bytes, cw, budget)
    TH = PATCH * th_p
    n_tiles = Hp // th_p
    n_tile_cols = th_p * Wp

    # ---- single fused host pass over x: im2col + bf16 cast -----------------
    #   pt[b, t, (c,dh,dw), j*Wp+wp] = x[b, c, 4*(t*th_p+j)+dh, 4*wp+dw]
    pt = (x_nchw.reshape(B, C, n_tiles, th_p, PATCH, Wp, PATCH)
          .transpose(0, 2, 1, 4, 6, 3, 5)
          .reshape(B, n_tiles, K, n_tile_cols)
          .astype(jnp.bfloat16))

    # ---- weights (tiny, prepared once) --------------------------------------
    wf_t = params["w_feat"].T                                     # (150, K)
    wf_pad = jnp.zeros((M_FEAT, K), jnp.float32).at[:MASK_CHANNELS].set(wf_t)
    wux = params["w_up"][MASK_CHANNELS:].T                        # (n_kp, C)
    eye4 = jnp.eye(PATCH, dtype=jnp.float32)
    # wx[(dw, n, dh), (c, dh', dw')] = wux[n, c] * d(dh,dh') * d(dw,dw')
    wx = jnp.einsum('nc,hH,wW->wnhcHW', wux, eye4, eye4).reshape(
        PATCH * PATCH * n_kp, K)
    w_all = jnp.concatenate([wf_pad, wx], axis=0).astype(jnp.bfloat16)

    bf = jnp.zeros((M_FEAT, 1), jnp.float32).at[:MASK_CHANNELS, 0].set(
        params["b_feat"])
    wuf = jnp.zeros((n_kp, M_FEAT), jnp.float32).at[:, :MASK_CHANNELS].set(
        params["w_up"][:MASK_CHANNELS].T).astype(jnp.bfloat16)
    bu = params["b_up"].reshape(n_kp, 1).astype(jnp.float32)

    # O(W) expansion tiles: e_up[dw, p, 4p+dw] = 1, e_rep = sum_dw e_up[dw]
    p_idx = jnp.arange(cw)
    q_idx = jnp.arange(PATCH * cw)
    dw_idx = jnp.arange(PATCH)
    e_up = (q_idx[None, None, :]
            == PATCH * p_idx[None, :, None] + dw_idx[:, None, None]
            ).astype(jnp.bfloat16)                                # (4, cw, 4cw)
    e_rep = e_up.sum(axis=0).astype(jnp.bfloat16)                 # (cw, 4cw)

    grid = (B, n_tiles)
    kernel = functools.partial(_fused_kernel, th_p=th_p, n_kp=n_kp)

    m_all = M_FEAT + PATCH * PATCH * n_kp
    flops = int(2 * B * Hp * Wp * K * m_all
                + 2 * B * Hp * Wp * M_FEAT * n_kp
                + 2 * B * Hp * (Wp // cw) * cw * PATCH * cw
                * (n_kp + PATCH * PATCH * n_kp))
    bytes_accessed = int(pt.size * 2
                         + B * n_kp * H * W * out_bytes
                         + (w_all.size + wuf.size + e_up.size + e_rep.size) * 2
                         + (bf.size + bu.size) * 4)

    return pl.pallas_call(
        kernel,
        out_shape=jax.ShapeDtypeStruct((B, n_kp, H, W), out_dtype),
        grid_spec=pltpu.PrefetchScalarGridSpec(
            num_scalar_prefetch=0,
            grid=grid,
            in_specs=[
                pl.BlockSpec((1, 1, K, n_tile_cols), lambda b, t: (b, t, 0, 0)),
                pl.BlockSpec((m_all, K), lambda b, t: (0, 0)),
                pl.BlockSpec((M_FEAT, 1), lambda b, t: (0, 0)),
                pl.BlockSpec((n_kp, M_FEAT), lambda b, t: (0, 0)),
                pl.BlockSpec((n_kp, 1), lambda b, t: (0, 0)),
                pl.BlockSpec((cw, PATCH * cw), lambda b, t: (0, 0)),
                pl.BlockSpec((PATCH, cw, PATCH * cw), lambda b, t: (0, 0, 0)),
            ],
            out_specs=pl.BlockSpec((1, n_kp, TH, W), lambda b, t: (b, 0, t, 0)),
            scratch_shapes=[pltpu.VMEM((th_p, PATCH * n_kp, W), jnp.float32)],
        ),
        compiler_params=pltpu.CompilerParams(
            dimension_semantics=("parallel", "parallel"),
            vmem_limit_bytes=vmem_limit),
        cost_estimate=pl.CostEstimate(
            flops=flops, transcendentals=0, bytes_accessed=bytes_accessed),
    )(pt, w_all, bf, wuf, bu, e_rep, e_up)


# ----------------------------------------------------------------------------
# Pure-JAX reference (same math, no fusion) for a correctness check.
# ----------------------------------------------------------------------------
def _reference_forward(params, x_nchw):
    B, C, H, W = x_nchw.shape
    Hp, Wp = H // PATCH, W // PATCH
    x = x_nchw.astype(jnp.float32)
    p = x.reshape(B, C, Hp, PATCH, Wp, PATCH).transpose(0, 2, 4, 1, 3, 5)
    p = p.reshape(B * Hp * Wp, PATCH * PATCH * C)
    feat = jnp.maximum(p @ params["w_feat"] + params["b_feat"], 0.0)
    feat = feat.reshape(B, Hp, Wp, MASK_CHANNELS)
    feat_up = jnp.repeat(jnp.repeat(feat, PATCH, axis=1), PATCH, axis=2)
    fused = jnp.concatenate([feat_up, x.transpose(0, 2, 3, 1)], axis=-1)
    logits = fused @ params["w_up"] + params["b_up"]
    return logits.transpose(0, 3, 1, 2)


if __name__ == "__main__":
    B, C, H, W = 2, 4, 16, 16
    NUM_KEYPOINTS = 4

    key = jax.random.PRNGKey(0)
    kx, kp = jax.random.split(key)
    x = jax.random.normal(kx, (B, C, H, W), jnp.float32)
    params = init_params(C, NUM_KEYPOINTS, kp)

    fwd = jax.jit(composed_model_forward, static_argnames=("out_dtype",))
    out = jax.block_until_ready(fwd(params, x))

    assert out.shape == (B, NUM_KEYPOINTS, H, W), out.shape
    assert bool(jnp.all(jnp.isfinite(out)))
    ref = _reference_forward(params, x)
    max_err = float(jnp.max(jnp.abs(out - ref)))
    assert max_err < 5e-2, f"max abs error vs reference: {max_err}"
    print("KERNEL_OK")
</pallas_src>

<mosaic_0001>
module attributes {stable_mosaic.version = 11 : i64} {
  func.func @_fused_kernel(%arg0: i32, %arg1: i32, %arg2: memref<1x1x64x16xbf16, #tpu.memory_space<vmem>>, %arg3: memref<216x64xbf16, #tpu.memory_space<vmem>>, %arg4: memref<152x1xf32, #tpu.memory_space<vmem>>, %arg5: memref<4x152xbf16, #tpu.memory_space<vmem>>, %arg6: memref<4x1xf32, #tpu.memory_space<vmem>>, %arg7: memref<4x16xbf16, #tpu.memory_space<vmem>>, %arg8: memref<4x4x16xbf16, #tpu.memory_space<vmem>>, %arg9: memref<1x4x16x16xf32, #tpu.memory_space<vmem>>, %arg10: memref<4x16x16xf32, #tpu.memory_space<vmem>>) attributes {dimension_semantics = [#tpu.dimension_semantics<parallel>, #tpu.dimension_semantics<parallel>], iteration_bounds = array<i64: 2, 1>, scalar_prefetch = 0 : i64, scratch_operands = 1 : i64, tpu.core_type = #tpu.core_type<tc>, window_params = [{transform_indices = @transform_0, window_bounds = array<i64: 1, 1, 64, 16>}, {pipeline_mode = #tpu.pipeline_mode<synchronous>, transform_indices = @transform_1, window_bounds = array<i64: 216, 64>}, {pipeline_mode = #tpu.pipeline_mode<synchronous>, transform_indices = @transform_2, window_bounds = array<i64: 152, 1>}, {pipeline_mode = #tpu.pipeline_mode<synchronous>, transform_indices = @transform_3, window_bounds = array<i64: 4, 152>}, {pipeline_mode = #tpu.pipeline_mode<synchronous>, transform_indices = @transform_4, window_bounds = array<i64: 4, 1>}, {pipeline_mode = #tpu.pipeline_mode<synchronous>, transform_indices = @transform_5, window_bounds = array<i64: 4, 16>}, {pipeline_mode = #tpu.pipeline_mode<synchronous>, transform_indices = @transform_6, window_bounds = array<i64: 4, 4, 16>}, {transform_indices = @transform_7, window_bounds = array<i64: 1, 4, 16, 16>}]} {
    %c0 = arith.constant 0 : index
    %c0_0 = arith.constant 0 : index
    %c0_1 = arith.constant 0 : index
    %c0_2 = arith.constant 0 : index
    %0 = vector.load %arg2[%c0, %c0_0, %c0_1, %c0_2] : memref<1x1x64x16xbf16, #tpu.memory_space<vmem>>, vector<1x1x64x16xbf16>
    %1 = vector.shape_cast %0 : vector<1x1x64x16xbf16> to vector<64x16xbf16>
    %c0_3 = arith.constant 0 : index
    %c0_4 = arith.constant 0 : index
    %2 = vector.load %arg7[%c0_3, %c0_4] : memref<4x16xbf16, #tpu.memory_space<vmem>>, vector<4x16xbf16>
    %c0_5 = arith.constant 0 : index
    %c0_6 = arith.constant 0 : index
    %3 = vector.load %arg6[%c0_5, %c0_6] : memref<4x1xf32, #tpu.memory_space<vmem>>, vector<4x1xf32>
    %c0_7 = arith.constant 0 : index
    %c0_8 = arith.constant 0 : index
    %4 = vector.load %arg3[%c0_7, %c0_8] : memref<216x64xbf16, #tpu.memory_space<vmem>>, vector<216x64xbf16>
    %cst = arith.constant dense<0.000000e+00> : vector<216x16xf32>
    %5 = tpu.matmul %4, %1, %cst {dimension_numbers = #tpu.dot_dimension_numbers<[1], [0], [0], [1], [0, 0, 1, 1], [], []>} : vector<216x64xbf16>, vector<64x16xbf16>, vector<216x16xf32> -> vector<216x16xf32>
    %6 = vector.extract_strided_slice %5 {offsets = [0, 0], sizes = [152, 16], strides = [1, 1]} : vector<216x16xf32> to vector<152x16xf32>
    %c0_9 = arith.constant 0 : index
    %c0_10 = arith.constant 0 : index
    %7 = vector.load %arg4[%c0_9, %c0_10] : memref<152x1xf32, #tpu.memory_space<vmem>>, vector<152x1xf32>
    %8 = vector.broadcast %7 : vector<152x1xf32> to vector<152x16xf32>
    %9 = arith.addf %6, %8 : vector<152x16xf32>
    %cst_11 = arith.constant 0.000000e+00 : f32
    %10 = vector.broadcast %cst_11 : f32 to vector<152x16xf32>
    %11 = arith.maximumf %9, %10 : vector<152x16xf32>
    %12 = vector.extract_strided_slice %5 {offsets = [152, 0], sizes = [64, 16], strides = [1, 1]} : vector<216x16xf32> to vector<64x16xf32>
    %13 = arith.truncf %12 : vector<64x16xf32> to vector<64x16xbf16>
    %c0_12 = arith.constant 0 : index
    %c0_13 = arith.constant 0 : index
    %14 = vector.load %arg5[%c0_12, %c0_13] : memref<4x152xbf16, #tpu.memory_space<vmem>>, vector<4x152xbf16>
    %15 = arith.truncf %11 : vector<152x16xf32> to vector<152x16xbf16>
    %cst_14 = arith.constant dense<0.000000e+00> : vector<4x16xf32>
    %16 = tpu.matmul %14, %15, %cst_14 {dimension_numbers = #tpu.dot_dimension_numbers<[1], [0], [0], [1], [0, 0, 1, 1], [], []>} : vector<4x152xbf16>, vector<152x16xbf16>, vector<4x16xf32> -> vector<4x16xf32>
    %17 = arith.truncf %16 : vector<4x16xf32> to vector<4x16xbf16>
    %18 = vector.extract_strided_slice %17 {offsets = [0, 0], sizes = [4, 4], strides = [1, 1]} : vector<4x16xbf16> to vector<4x4xbf16>
    %cst_15 = arith.constant dense<0.000000e+00> : vector<4x16xf32>
    %19 = tpu.matmul %18, %2, %cst_15 {dimension_numbers = #tpu.dot_dimension_numbers<[1], [0], [0], [1], [0, 0, 1, 1], [], []>} : vector<4x4xbf16>, vector<4x16xbf16>, vector<4x16xf32> -> vector<4x16xf32>
    %20 = vector.extract_strided_slice %13 {offsets = [0, 0], sizes = [16, 4], strides = [1, 1]} : vector<64x16xbf16> to vector<16x4xbf16>
    %c0_16 = arith.constant 0 : index
    %c0_17 = arith.constant 0 : index
    %c0_18 = arith.constant 0 : index
    %21 = vector.load %arg8[%c0_16, %c0_17, %c0_18] : memref<4x4x16xbf16, #tpu.memory_space<vmem>>, vector<1x4x16xbf16>
    %22 = vector.shape_cast %21 : vector<1x4x16xbf16> to vector<4x16xbf16>
    %cst_19 = arith.constant dense<0.000000e+00> : vector<16x16xf32>
    %23 = tpu.matmul %20, %22, %cst_19 {dimension_numbers = #tpu.dot_dimension_numbers<[1], [0], [0], [1], [0, 0, 1, 1], [], []>} : vector<16x4xbf16>, vector<4x16xbf16>, vector<16x16xf32> -> vector<16x16xf32>
    %24 = vector.extract_strided_slice %13 {offsets = [16, 0], sizes = [16, 4], strides = [1, 1]} : vector<64x16xbf16> to vector<16x4xbf16>
    %c1 = arith.constant 1 : index
    %c0_20 = arith.constant 0 : index
    %c0_21 = arith.constant 0 : index
    %25 = vector.load %arg8[%c1, %c0_20, %c0_21] : memref<4x4x16xbf16, #tpu.memory_space<vmem>>, vector<1x4x16xbf16>
    %26 = vector.shape_cast %25 : vector<1x4x16xbf16> to vector<4x16xbf16>
    %cst_22 = arith.constant dense<0.000000e+00> : vector<16x16xf32>
    %27 = tpu.matmul %24, %26, %cst_22 {dimension_numbers = #tpu.dot_dimension_numbers<[1], [0], [0], [1], [0, 0, 1, 1], [], []>} : vector<16x4xbf16>, vector<4x16xbf16>, vector<16x16xf32> -> vector<16x16xf32>
    %28 = arith.addf %23, %27 : vector<16x16xf32>
    %29 = vector.extract_strided_slice %13 {offsets = [32, 0], sizes = [16, 4], strides = [1, 1]} : vector<64x16xbf16> to vector<16x4xbf16>
    %c2 = arith.constant 2 : index
    %c0_23 = arith.constant 0 : index
    %c0_24 = arith.constant 0 : index
    %30 = vector.load %arg8[%c2, %c0_23, %c0_24] : memref<4x4x16xbf16, #tpu.memory_space<vmem>>, vector<1x4x16xbf16>
    %31 = vector.shape_cast %30 : vector<1x4x16xbf16> to vector<4x16xbf16>
    %cst_25 = arith.constant dense<0.000000e+00> : vector<16x16xf32>
    %32 = tpu.matmul %29, %31, %cst_25 {dimension_numbers = #tpu.dot_dimension_numbers<[1], [0], [0], [1], [0, 0, 1, 1], [], []>} : vector<16x4xbf16>, vector<4x16xbf16>, vector<16x16xf32> -> vector<16x16xf32>
    %33 = arith.addf %28, %32 : vector<16x16xf32>
    %34 = vector.extract_strided_slice %13 {offsets = [48, 0], sizes = [16, 4], strides = [1, 1]} : vector<64x16xbf16> to vector<16x4xbf16>
    %c3 = arith.constant 3 : index
    %c0_26 = arith.constant 0 : index
    %c0_27 = arith.constant 0 : index
    %35 = vector.load %arg8[%c3, %c0_26, %c0_27] : memref<4x4x16xbf16, #tpu.memory_space<vmem>>, vector<1x4x16xbf16>
    %36 = vector.shape_cast %35 : vector<1x4x16xbf16> to vector<4x16xbf16>
    %cst_28 = arith.constant dense<0.000000e+00> : vector<16x16xf32>
    %37 = tpu.matmul %34, %36, %cst_28 {dimension_numbers = #tpu.dot_dimension_numbers<[1], [0], [0], [1], [0, 0, 1, 1], [], []>} : vector<16x4xbf16>, vector<4x16xbf16>, vector<16x16xf32> -> vector<16x16xf32>
    %38 = arith.addf %33, %37 : vector<16x16xf32>
    %39 = vector.broadcast %3 : vector<4x1xf32> to vector<4x16xf32>
    %40 = arith.addf %19, %39 : vector<4x16xf32>
    %41 = vector.shape_cast %40 : vector<4x16xf32> to vector<4x1x16xf32>
    %42 = vector.shape_cast %41 : vector<4x1x16xf32> to vector<4x1x16xf32>
    %43 = vector.broadcast %42 : vector<4x1x16xf32> to vector<4x4x16xf32>
    %44 = vector.shape_cast %43 : vector<4x4x16xf32> to vector<16x16xf32>
    %45 = arith.addf %44, %38 : vector<16x16xf32>
    %c0_29 = arith.constant 0 : index
    %c0_30 = arith.constant 0 : index
    %c0_31 = arith.constant 0 : index
    %46 = vector.load %arg10[%c0_29, %c0_30, %c0_31] : memref<4x16x16xf32, #tpu.memory_space<vmem>>, vector<1x16x16xf32>
    %47 = vector.shape_cast %46 : vector<1x16x16xf32> to vector<16x16xf32>
    %48 = vector.shape_cast %45 : vector<16x16xf32> to vector<1x16x16xf32>
    tpu.vector_store %arg10[%c0_29, %c0_30, %c0_31], %48 {strides = array<i32>} : memref<4x16x16xf32, #tpu.memory_space<vmem>>, vector<1x16x16xf32>,
    %49 = vector.extract_strided_slice %17 {offsets = [0, 4], sizes = [4, 4], strides = [1, 1]} : vector<4x16xbf16> to vector<4x4xbf16>
    %cst_32 = arith.constant dense<0.000000e+00> : vector<4x16xf32>
    %50 = tpu.matmul %49, %2, %cst_32 {dimension_numbers = #tpu.dot_dimension_numbers<[1], [0], [0], [1], [0, 0, 1, 1], [], []>} : vector<4x4xbf16>, vector<4x16xbf16>, vector<4x16xf32> -> vector<4x16xf32>
    %51 = vector.extract_strided_slice %13 {offsets = [0, 4], sizes = [16, 4], strides = [1, 1]} : vector<64x16xbf16> to vector<16x4xbf16>
    %c0_33 = arith.constant 0 : index
    %c0_34 = arith.constant 0 : index
    %c0_35 = arith.constant 0 : index
    %52 = vector.load %arg8[%c0_33, %c0_34, %c0_35] : memref<4x4x16xbf16, #tpu.memory_space<vmem>>, vector<1x4x16xbf16>
    %53 = vector.shape_cast %52 : vector<1x4x16xbf16> to vector<4x16xbf16>
    %cst_36 = arith.constant dense<0.000000e+00> : vector<16x16xf32>
    %54 = tpu.matmul %51, %53, %cst_36 {dimension_numbers = #tpu.dot_dimension_numbers<[1], [0], [0], [1], [0, 0, 1, 1], [], []>} : vector<16x4xbf16>, vector<4x16xbf16>, vector<16x16xf32> -> vector<16x16xf32>
    %55 = vector.extract_strided_slice %13 {offsets = [16, 4], sizes = [16, 4], strides = [1, 1]} : vector<64x16xbf16> to vector<16x4xbf16>
    %c1_37 = arith.constant 1 : index
    %c0_38 = arith.constant 0 : index
    %c0_39 = arith.constant 0 : index
    %56 = vector.load %arg8[%c1_37, %c0_38, %c0_39] : memref<4x4x16xbf16, #tpu.memory_space<vmem>>, vector<1x4x16xbf16>
    %57 = vector.shape_cast %56 : vector<1x4x16xbf16> to vector<4x16xbf16>
    %cst_40 = arith.constant dense<0.000000e+00> : vector<16x16xf32>
    %58 = tpu.matmul %55, %57, %cst_40 {dimension_numbers = #tpu.dot_dimension_numbers<[1], [0], [0], [1], [0, 0, 1, 1], [], []>} : vector<16x4xbf16>, vector<4x16xbf16>, vector<16x16xf32> -> vector<16x16xf32>
    %59 = arith.addf %54, %58 : vector<16x16xf32>
    %60 = vector.extract_strided_slice %13 {offsets = [32, 4], sizes = [16, 4], strides = [1, 1]} : vector<64x16xbf16> to vector<16x4xbf16>
    %c2_41 = arith.constant 2 : index
    %c0_42 = arith.constant 0 : index
    %c0_43 = arith.constant 0 : index
    %61 = vector.load %arg8[%c2_41, %c0_42, %c0_43] : memref<4x4x16xbf16, #tpu.memory_space<vmem>>, vector<1x4x16xbf16>
    %62 = vector.shape_cast %61 : vector<1x4x16xbf16> to vector<4x16xbf16>
    %cst_44 = arith.constant dense<0.000000e+00> : vector<16x16xf32>
    %63 = tpu.matmul %60, %62, %cst_44 {dimension_numbers = #tpu.dot_dimension_numbers<[1], [0], [0], [1], [0, 0, 1, 1], [], []>} : vector<16x4xbf16>, vector<4x16xbf16>, vector<16x16xf32> -> vector<16x16xf32>
    %64 = arith.addf %59, %63 : vector<16x16xf32>
    %65 = vector.extract_strided_slice %13 {offsets = [48, 4], sizes = [16, 4], strides = [1, 1]} : vector<64x16xbf16> to vector<16x4xbf16>
    %c3_45 = arith.constant 3 : index
    %c0_46 = arith.constant 0 : index
    %c0_47 = arith.constant 0 : index
    %66 = vector.load %arg8[%c3_45, %c0_46, %c0_47] : memref<4x4x16xbf16, #tpu.memory_space<vmem>>, vector<1x4x16xbf16>
    %67 = vector.shape_cast %66 : vector<1x4x16xbf16> to vector<4x16xbf16>
    %cst_48 = arith.constant dense<0.000000e+00> : vector<16x16xf32>
    %68 = tpu.matmul %65, %67, %cst_48 {dimension_numbers = #tpu.dot_dimension_numbers<[1], [0], [0], [1], [0, 0, 1, 1], [], []>} : vector<16x4xbf16>, vector<4x16xbf16>, vector<16x16xf32> -> vector<16x16xf32>
    %69 = arith.addf %64, %68 : vector<16x16xf32>
    %70 = vector.broadcast %3 : vector<4x1xf32> to vector<4x16xf32>
    %71 = arith.addf %50, %70 : vector<4x16xf32>
    %72 = vector.shape_cast %71 : vector<4x16xf32> to vector<4x1x16xf32>
    %73 = vector.shape_cast %72 : vector<4x1x16xf32> to vector<4x1x16xf32>
    %74 = vector.broadcast %73 : vector<4x1x16xf32> to vector<4x4x16xf32>
    %75 = vector.shape_cast %74 : vector<4x4x16xf32> to vector<16x16xf32>
    %76 = arith.addf %75, %69 : vector<16x16xf32>
    %c1_49 = arith.constant 1 : index
    %c0_50 = arith.constant 0 : index
    %c0_51 = arith.constant 0 : index
    %77 = vector.load %arg10[%c1_49, %c0_50, %c0_51] : memref<4x16x16xf32, #tpu.memory_space<vmem>>, vector<1x16x16xf32>
    %78 = vector.shape_cast %77 : vector<1x16x16xf32> to vector<16x16xf32>
    %79 = vector.shape_cast %76 : vector<16x16xf32> to vector<1x16x16xf32>
    tpu.vector_store %arg10[%c1_49, %c0_50, %c0_51], %79 {strides = array<i32>} : memref<4x16x16xf32, #tpu.memory_space<vmem>>, vector<1x16x16xf32>,
    %80 = vector.extract_strided_slice %17 {offsets = [0, 8], sizes = [4, 4], strides = [1, 1]} : vector<4x16xbf16> to vector<4x4xbf16>
    %cst_52 = arith.constant dense<0.000000e+00> : vector<4x16xf32>
    %81 = tpu.matmul %80, %2, %cst_52 {dimension_numbers = #tpu.dot_dimension_numbers<[1], [0], [0], [1], [0, 0, 1, 1], [], []>} : vector<4x4xbf16>, vector<4x16xbf16>, vector<4x16xf32> -> vector<4x16xf32>
    %82 = vector.extract_strided_slice %13 {offsets = [0, 8], sizes = [16, 4], strides = [1, 1]} : vector<64x16xbf16> to vector<16x4xbf16>
    %c0_53 = arith.constant 0 : index
    %c0_54 = arith.constant 0 : index
    %c0_55 = arith.constant 0 : index
    %83 = vector.load %arg8[%c0_53, %c0_54, %c0_55] : memref<4x4x16xbf16, #tpu.memory_space<vmem>>, vector<1x4x16xbf16>
    %84 = vector.shape_cast %83 : vector<1x4x16xbf16> to vector<4x16xbf16>
    %cst_56 = arith.constant dense<0.000000e+00> : vector<16x16xf32>
    %85 = tpu.matmul %82, %84, %cst_56 {dimension_numbers = #tpu.dot_dimension_numbers<[1], [0], [0], [1], [0, 0, 1, 1], [], []>} : vector<16x4xbf16>, vector<4x16xbf16>, vector<16x16xf32> -> vector<16x16xf32>
    %86 = vector.extract_strided_slice %13 {offsets = [16, 8], sizes = [16, 4], strides = [1, 1]} : vector<64x16xbf16> to vector<16x4xbf16>
    %c1_57 = arith.constant 1 : index
    %c0_58 = arith.constant 0 : index
    %c0_59 = arith.constant 0 : index
    %87 = vector.load %arg8[%c1_57, %c0_58, %c0_59] : memref<4x4x16xbf16, #tpu.memory_space<vmem>>, vector<1x4x16xbf16>
    %88 = vector.shape_cast %87 : vector<1x4x16xbf16> to vector<4x16xbf16>
    %cst_60 = arith.constant dense<0.000000e+00> : vector<16x16xf32>
    %89 = tpu.matmul %86, %88, %cst_60 {dimension_numbers = #tpu.dot_dimension_numbers<[1], [0], [0], [1], [0, 0, 1, 1], [], []>} : vector<16x4xbf16>, vector<4x16xbf16>, vector<16x16xf32> -> vector<16x16xf32>
    %90 = arith.addf %85, %89 : vector<16x16xf32>
    %91 = vector.extract_strided_slice %13 {offsets = [32, 8], sizes = [16, 4], strides = [1, 1]} : vector<64x16xbf16> to vector<16x4xbf16>
    %c2_61 = arith.constant 2 : index
    %c0_62 = arith.constant 0 : index
    %c0_63 = arith.constant 0 : index
    %92 = vector.load %arg8[%c2_61, %c0_62, %c0_63] : memref<4x4x16xbf16, #tpu.memory_space<vmem>>, vector<1x4x16xbf16>
    %93 = vector.shape_cast %92 : vector<1x4x16xbf16> to vector<4x16xbf16>
    %cst_64 = arith.constant dense<0.000000e+00> : vector<16x16xf32>
    %94 = tpu.matmul %91, %93, %cst_64 {dimension_numbers = #tpu.dot_dimension_numbers<[1], [0], [0], [1], [0, 0, 1, 1], [], []>} : vector<16x4xbf16>, vector<4x16xbf16>, vector<16x16xf32> -> vector<16x16xf32>
    %95 = arith.addf %90, %94 : vector<16x16xf32>
    %96 = vector.extract_strided_slice %13 {offsets = [48, 8], sizes = [16, 4], strides = [1, 1]} : vector<64x16xbf16> to vector<16x4xbf16>
    %c3_65 = arith.constant 3 : index
    %c0_66 = arith.constant 0 : index
    %c0_67 = arith.constant 0 : index
    %97 = vector.load %arg8[%c3_65, %c0_66, %c0_67] : memref<4x4x16xbf16, #tpu.memory_space<vmem>>, vector<1x4x16xbf16>
    %98 = vector.shape_cast %97 : vector<1x4x16xbf16> to vector<4x16xbf16>
    %cst_68 = arith.constant dense<0.000000e+00> : vector<16x16xf32>
    %99 = tpu.matmul %96, %98, %cst_68 {dimension_numbers = #tpu.dot_dimension_numbers<[1], [0], [0], [1], [0, 0, 1, 1], [], []>} : vector<16x4xbf16>, vector<4x16xbf16>, vector<16x16xf32> -> vector<16x16xf32>
    %100 = arith.addf %95, %99 : vector<16x16xf32>
    %101 = vector.broadcast %3 : vector<4x1xf32> to vector<4x16xf32>
    %102 = arith.addf %81, %101 : vector<4x16xf32>
    %103 = vector.shape_cast %102 : vector<4x16xf32> to vector<4x1x16xf32>
    %104 = vector.shape_cast %103 : vector<4x1x16xf32> to vector<4x1x16xf32>
    %105 = vector.broadcast %104 : vector<4x1x16xf32> to vector<4x4x16xf32>
    %106 = vector.shape_cast %105 : vector<4x4x16xf32> to vector<16x16xf32>
    %107 = arith.addf %106, %100 : vector<16x16xf32>
    %c2_69 = arith.constant 2 : index
    %c0_70 = arith.constant 0 : index
    %c0_71 = arith.constant 0 : index
    %108 = vector.load %arg10[%c2_69, %c0_70, %c0_71] : memref<4x16x16xf32, #tpu.memory_space<vmem>>, vector<1x16x16xf32>
    %109 = vector.shape_cast %108 : vector<1x16x16xf32> to vector<16x16xf32>
    %110 = vector.shape_cast %107 : vector<16x16xf32> to vector<1x16x16xf32>
    tpu.vector_store %arg10[%c2_69, %c0_70, %c0_71], %110 {strides = array<i32>} : memref<4x16x16xf32, #tpu.memory_space<vmem>>, vector<1x16x16xf32>,
    %111 = vector.extract_strided_slice %17 {offsets = [0, 12], sizes = [4, 4], strides = [1, 1]} : vector<4x16xbf16> to vector<4x4xbf16>
    %cst_72 = arith.constant dense<0.000000e+00> : vector<4x16xf32>
    %112 = tpu.matmul %111, %2, %cst_72 {dimension_numbers = #tpu.dot_dimension_numbers<[1], [0], [0], [1], [0, 0, 1, 1], [], []>} : vector<4x4xbf16>, vector<4x16xbf16>, vector<4x16xf32> -> vector<4x16xf32>
    %113 = vector.extract_strided_slice %13 {offsets = [0, 12], sizes = [16, 4], strides = [1, 1]} : vector<64x16xbf16> to vector<16x4xbf16>
    %c0_73 = arith.constant 0 : index
    %c0_74 = arith.constant 0 : index
    %c0_75 = arith.constant 0 : index
    %114 = vector.load %arg8[%c0_73, %c0_74, %c0_75] : memref<4x4x16xbf16, #tpu.memory_space<vmem>>, vector<1x4x16xbf16>
    %115 = vector.shape_cast %114 : vector<1x4x16xbf16> to vector<4x16xbf16>
    %cst_76 = arith.constant dense<0.000000e+00> : vector<16x16xf32>
    %116 = tpu.matmul %113, %115, %cst_76 {dimension_numbers = #tpu.dot_dimension_numbers<[1], [0], [0], [1], [0, 0, 1, 1], [], []>} : vector<16x4xbf16>, vector<4x16xbf16>, vector<16x16xf32> -> vector<16x16xf32>
    %117 = vector.extract_strided_slice %13 {offsets = [16, 12], sizes = [16, 4], strides = [1, 1]} : vector<64x16xbf16> to vector<16x4xbf16>
    %c1_77 = arith.constant 1 : index
    %c0_78 = arith.constant 0 : index
    %c0_79 = arith.constant 0 : index
    %118 = vector.load %arg8[%c1_77, %c0_78, %c0_79] : memref<4x4x16xbf16, #tpu.memory_space<vmem>>, vector<1x4x16xbf16>
    %119 = vector.shape_cast %118 : vector<1x4x16xbf16> to vector<4x16xbf16>
    %cst_80 = arith.constant dense<0.000000e+00> : vector<16x16xf32>
    %120 = tpu.matmul %117, %119, %cst_80 {dimension_numbers = #tpu.dot_dimension_numbers<[1], [0], [0], [1], [0, 0, 1, 1], [], []>} : vector<16x4xbf16>, vector<4x16xbf16>, vector<16x16xf32> -> vector<16x16xf32>
    %121 = arith.addf %116, %120 : vector<16x16xf32>
    %122 = vector.extract_strided_slice %13 {offsets = [32, 12], sizes = [16, 4], strides = [1, 1]} : vector<64x16xbf16> to vector<16x4xbf16>
    %c2_81 = arith.constant 2 : index
    %c0_82 = arith.constant 0 : index
    %c0_83 = arith.constant 0 : index
    %123 = vector.load %arg8[%c2_81, %c0_82, %c0_83] : memref<4x4x16xbf16, #tpu.memory_space<vmem>>, vector<1x4x16xbf16>
    %124 = vector.shape_cast %123 : vector<1x4x16xbf16> to vector<4x16xbf16>
    %cst_84 = arith.constant dense<0.000000e+00> : vector<16x16xf32>
    %125 = tpu.matmul %122, %124, %cst_84 {dimension_numbers = #tpu.dot_dimension_numbers<[1], [0], [0], [1], [0, 0, 1, 1], [], []>} : vector<16x4xbf16>, vector<4x16xbf16>, vector<16x16xf32> -> vector<16x16xf32>
    %126 = arith.addf %121, %125 : vector<16x16xf32>
    %127 = vector.extract_strided_slice %13 {offsets = [48, 12], sizes = [16, 4], strides = [1, 1]} : vector<64x16xbf16> to vector<16x4xbf16>
    %c3_85 = arith.constant 3 : index
    %c0_86 = arith.constant 0 : index
    %c0_87 = arith.constant 0 : index
    %128 = vector.load %arg8[%c3_85, %c0_86, %c0_87] : memref<4x4x16xbf16, #tpu.memory_space<vmem>>, vector<1x4x16xbf16>
    %129 = vector.shape_cast %128 : vector<1x4x16xbf16> to vector<4x16xbf16>
    %cst_88 = arith.constant dense<0.000000e+00> : vector<16x16xf32>
    %130 = tpu.matmul %127, %129, %cst_88 {dimension_numbers = #tpu.dot_dimension_numbers<[1], [0], [0], [1], [0, 0, 1, 1], [], []>} : vector<16x4xbf16>, vector<4x16xbf16>, vector<16x16xf32> -> vector<16x16xf32>
    %131 = arith.addf %126, %130 : vector<16x16xf32>
    %132 = vector.broadcast %3 : vector<4x1xf32> to vector<4x16xf32>
    %133 = arith.addf %112, %132 : vector<4x16xf32>
    %134 = vector.shape_cast %133 : vector<4x16xf32> to vector<4x1x16xf32>
    %135 = vector.shape_cast %134 : vector<4x1x16xf32> to vector<4x1x16xf32>
    %136 = vector.broadcast %135 : vector<4x1x16xf32> to vector<4x4x16xf32>
    %137 = vector.shape_cast %136 : vector<4x4x16xf32> to vector<16x16xf32>
    %138 = arith.addf %137, %131 : vector<16x16xf32>
    %c3_89 = arith.constant 3 : index
    %c0_90 = arith.constant 0 : index
    %c0_91 = arith.constant 0 : index
    %139 = vector.load %arg10[%c3_89, %c0_90, %c0_91] : memref<4x16x16xf32, #tpu.memory_space<vmem>>, vector<1x16x16xf32>
    %140 = vector.shape_cast %139 : vector<1x16x16xf32> to vector<16x16xf32>
    %141 = vector.shape_cast %138 : vector<16x16xf32> to vector<1x16x16xf32>
    tpu.vector_store %arg10[%c3_89, %c0_90, %c0_91], %141 {strides = array<i32>} : memref<4x16x16xf32, #tpu.memory_space<vmem>>, vector<1x16x16xf32>,
    %c0_92 = arith.constant 0 : index
    %c0_93 = arith.constant 0 : index
    %c0_94 = arith.constant 0 : index
    %142 = vector.load %arg10[%c0_92, %c0_93, %c0_94] : memref<4x16x16xf32, #tpu.memory_space<vmem>>, vector<4x4x16xf32>
    %143 = vector.shape_cast %142 : vector<4x4x16xf32> to vector<16x16xf32>
    %c0_95 = arith.constant 0 : index
    %c0_96 = arith.constant 0 : index
    %c0_97 = arith.constant 0 : index
    %c0_98 = arith.constant 0 : index
    %144 = vector.load %arg9[%c0_95, %c0_96, %c0_97, %c0_98] : memref<1x4x16x16xf32, #tpu.memory_space<vmem>>, vector<1x1x16x16xf32>
    %145 = vector.shape_cast %144 : vector<1x1x16x16xf32> to vector<16x16xf32>
    %146 = vector.shape_cast %143 : vector<16x16xf32> to vector<1x1x16x16xf32>
    tpu.vector_store %arg9[%c0_95, %c0_96, %c0_97, %c0_98], %146 {strides = array<i32>} : memref<1x4x16x16xf32, #tpu.memory_space<vmem>>, vector<1x1x16x16xf32>,
    %c0_99 = arith.constant 0 : index
    %c4 = arith.constant 4 : index
    %c0_100 = arith.constant 0 : index
    %147 = vector.load %arg10[%c0_99, %c4, %c0_100] : memref<4x16x16xf32, #tpu.memory_space<vmem>>, vector<4x4x16xf32>
    %148 = vector.shape_cast %147 : vector<4x4x16xf32> to vector<16x16xf32>
    %c0_101 = arith.constant 0 : index
    %c1_102 = arith.constant 1 : index
    %c0_103 = arith.constant 0 : index
    %c0_104 = arith.constant 0 : index
    %149 = vector.load %arg9[%c0_101, %c1_102, %c0_103, %c0_104] : memref<1x4x16x16xf32, #tpu.memory_space<vmem>>, vector<1x1x16x16xf32>
    %150 = vector.shape_cast %149 : vector<1x1x16x16xf32> to vector<16x16xf32>
    %151 = vector.shape_cast %148 : vector<16x16xf32> to vector<1x1x16x16xf32>
    tpu.vector_store %arg9[%c0_101, %c1_102, %c0_103, %c0_104], %151 {strides = array<i32>} : memref<1x4x16x16xf32, #tpu.memory_space<vmem>>, vector<1x1x16x16xf32>,
    %c0_105 = arith.constant 0 : index
    %c8 = arith.constant 8 : index
    %c0_106 = arith.constant 0 : index
    %152 = vector.load %arg10[%c0_105, %c8, %c0_106] : memref<4x16x16xf32, #tpu.memory_space<vmem>>, vector<4x4x16xf32>
    %153 = vector.shape_cast %152 : vector<4x4x16xf32> to vector<16x16xf32>
    %c0_107 = arith.constant 0 : index
    %c2_108 = arith.constant 2 : index
    %c0_109 = arith.constant 0 : index
    %c0_110 = arith.constant 0 : index
    %154 = vector.load %arg9[%c0_107, %c2_108, %c0_109, %c0_110] : memref<1x4x16x16xf32, #tpu.memory_space<vmem>>, vector<1x1x16x16xf32>
    %155 = vector.shape_cast %154 : vector<1x1x16x16xf32> to vector<16x16xf32>
    %156 = vector.shape_cast %153 : vector<16x16xf32> to vector<1x1x16x16xf32>
    tpu.vector_store %arg9[%c0_107, %c2_108, %c0_109, %c0_110], %156 {strides = array<i32>} : memref<1x4x16x16xf32, #tpu.memory_space<vmem>>, vector<1x1x16x16xf32>,
    %c0_111 = arith.constant 0 : index
    %c12 = arith.constant 12 : index
    %c0_112 = arith.constant 0 : index
    %157 = vector.load %arg10[%c0_111, %c12, %c0_112] : memref<4x16x16xf32, #tpu.memory_space<vmem>>, vector<4x4x16xf32>
    %158 = vector.shape_cast %157 : vector<4x4x16xf32> to vector<16x16xf32>
    %c0_113 = arith.constant 0 : index
    %c3_114 = arith.constant 3 : index
    %c0_115 = arith.constant 0 : index
    %c0_116 = arith.constant 0 : index
    %159 = vector.load %arg9[%c0_113, %c3_114, %c0_115, %c0_116] : memref<1x4x16x16xf32, #tpu.memory_space<vmem>>, vector<1x1x16x16xf32>
    %160 = vector.shape_cast %159 : vector<1x1x16x16xf32> to vector<16x16xf32>
    %161 = vector.shape_cast %158 : vector<16x16xf32> to vector<1x1x16x16xf32>
    tpu.vector_store %arg9[%c0_113, %c3_114, %c0_115, %c0_116], %161 {strides = array<i32>} : memref<1x4x16x16xf32, #tpu.memory_space<vmem>>, vector<1x1x16x16xf32>,
    return
  }
  func.func @transform_0(%arg0: i32, %arg1: i32) -> (i32, i32, i32, i32) {
    %c0_i32 = arith.constant 0 : i32
    %c0_i32_0 = arith.constant 0 : i32
    %c0_i32_1 = arith.constant 0 : i32
    return %arg0, %arg1, %c0_i32, %c0_i32_0 : i32, i32, i32, i32
  }
  func.func @transform_1(%arg0: i32, %arg1: i32) -> (i32, i32) {
    %c0_i32 = arith.constant 0 : i32
    %c0_i32_0 = arith.constant 0 : i32
    %c0_i32_1 = arith.constant 0 : i32
    return %c0_i32, %c0_i32_0 : i32, i32
  }
  func.func @transform_2(%arg0: i32, %arg1: i32) -> (i32, i32) {
    %c0_i32 = arith.constant 0 : i32
    %c0_i32_0 = arith.constant 0 : i32
    %c0_i32_1 = arith.constant 0 : i32
    return %c0_i32, %c0_i32_0 : i32, i32
  }
  func.func @transform_3(%arg0: i32, %arg1: i32) -> (i32, i32) {
    %c0_i32 = arith.constant 0 : i32
    %c0_i32_0 = arith.constant 0 : i32
    %c0_i32_1 = arith.constant 0 : i32
    return %c0_i32, %c0_i32_0 : i32, i32
  }
  func.func @transform_4(%arg0: i32, %arg1: i32) -> (i32, i32) {
    %c0_i32 = arith.constant 0 : i32
    %c0_i32_0 = arith.constant 0 : i32
    %c0_i32_1 = arith.constant 0 : i32
    return %c0_i32, %c0_i32_0 : i32, i32
  }
  func.func @transform_5(%arg0: i32, %arg1: i32) -> (i32, i32) {
    %c0_i32 = arith.constant 0 : i32
    %c0_i32_0 = arith.constant 0 : i32
    %c0_i32_1 = arith.constant 0 : i32
    return %c0_i32, %c0_i32_0 : i32, i32
  }
  func.func @transform_6(%arg0: i32, %arg1: i32) -> (i32, i32, i32) {
    %c0_i32 = arith.constant 0 : i32
    %c0_i32_0 = arith.constant 0 : i32
    %c0_i32_1 = arith.constant 0 : i32
    %c0_i32_2 = arith.constant 0 : i32
    return %c0_i32, %c0_i32_0, %c0_i32_1 : i32, i32, i32
  }
  func.func @transform_7(%arg0: i32, %arg1: i32) -> (i32, i32, i32, i32) {
    %c0_i32 = arith.constant 0 : i32
    %c0_i32_0 = arith.constant 0 : i32
    %c0_i32_1 = arith.constant 0 : i32
    return %arg0, %c0_i32, %arg1, %c0_i32_0 : i32, i32, i32, i32
  }
}

</mosaic_0001>

<llo_original>
// kernel: composed_model_forward.1
$region0: #{composed_model_forward.1}
  #allocation0 [shape = 'u32[]', space=smem, size = 0x4, offset = 0x4, fixed_abs, tag = 'smem constant byte address 0x4 - core index']
  #allocation1 [shape = 'u32[144,128]{1,0:T(1,128)}', space=vmem, size = 0x12000, scoped, tag = 'internal scratch']
  #allocation2 [shape = 'f32[4,16,16]{2,1,0:T(8,128)}', space=vmem, size = 0x8000, scoped, tag = 'scratch operand']
  %s0 = inlined_call_operand.vmem [shape: bf16[2,1,64,16], index: 0, kind: input, shape index: {}]
  %s1 = inlined_call_operand.vmem [shape: bf16[216,64], index: 1, kind: input, shape index: {}]
  %s2 = inlined_call_operand.vmem [shape: f32[152,1], index: 2, kind: input, shape index: {}]
  %s3 = inlined_call_operand.vmem [shape: bf16[4,152], index: 3, kind: input, shape index: {}]
  %s4 = inlined_call_operand.vmem [shape: f32[4,1], index: 4, kind: input, shape index: {}]
  %s5 = inlined_call_operand.vmem [shape: bf16[4,16], index: 5, kind: input, shape index: {}]
  %s6 = inlined_call_operand.vmem [shape: bf16[4,4,16], index: 6, kind: input, shape index: {}]
  %s7 = inlined_call_operand.hbm [shape: f32[2,4,16,16], index: 7, kind: output, shape index: {}]
  %s8 = sld [smem:[#allocation0]]
  $region61: #{composed_model_forward.1} parent=0
    _
  %s10 = ssub.s32 1, %s8
  %s11 = scalar_select 0, %s10, %s8
  $region1: #{composed_model_forward.1} parent=0
    #allocation3 [shape = 'u8[65536]{0}', space=vmem, size = 0x10000, scoped, tag = 'output window, operand 0']
    #allocation4 [shape = 's32[2]{0}', space=sflag, size = 0x8, scoped, tag = 'scoped memory for composed_model_forward.1']
    %12 = vsyncpa [#allocation4], 0
    %s13 = scalar_lea.sflag [#allocation4], 1
    %14 = vsyncpa %s13, 0
    loop: start=0, step=1, limit=4
    $region2: #{composed_model_forward.1} parent=1 // loop_pre_header
      _
    $region3: #{composed_model_forward.1} parent=1 // loop_header
      %s16 = sphi 0, %s20
      %p17 = scmp.ge.s32.totalorder %s16, 4
      %s23 = sphi 0, %s35
      %s24 = sphi 0, %s31
      %s25 = sphi 0, %s23
      %s26 = sphi 0, %s24
      %s27 = sphi 0, %s25
      %s28 = sphi 0, %s26
      %s40 = sphi 0, %s42
      %s43 = sphi 0, %s40
      %s44 = sphi 0, %s43
      %s60 = sphi 0, %s44
      %s64 = sphi 0, %s64
      %s66 = sphi 0, %s64
      %s67 = sphi 0, %s66
      %s81 = sphi 0, %s67
      %s85 = sphi 0, %s85
      %s87 = sphi 0, %s85
      %s88 = sphi 0, %s87
      %s102 = sphi 0, %s88
      %s106 = sphi 0, %s106
      %s108 = sphi 0, %s106
      %s109 = sphi 0, %s108
      %s123 = sphi 0, %s109
      %s127 = sphi 0, %s127
      %s129 = sphi 0, %s127
      %s130 = sphi 0, %s129
      %s144 = sphi 0, %s130
      %s148 = sphi 0, %s148
      %s150 = sphi 0, %s148
      %s151 = sphi 0, %s150
      %s165 = sphi 0, %s151
      %s169 = sphi 0, %s169
      %s171 = sphi 0, %s169
      %s172 = sphi 0, %s171
      %s186 = sphi 0, %s172
      %s194 = sphi 0, %s196
      %s197 = sphi 0, %s194
      %s198 = sphi 0, %s197
      %s214 = sphi 0, %s198
    $region4: #{composed_model_forward.1} parent=1 // loop_header_branch
      %19 = sbr.rel (%p17) target = $region8
    $region5: #{composed_model_forward.1} parent=1 // loop_body
      %s21 = ssub.s32 %s16, 1
      %s22 = ssub.s32 %s16, 2
      %s29 = sadd.s32 1, %s24
      %p30 = scmp.ge.s32.totalorder %s29, 1
      %s31 = scalar_select %p30, 0, %s29
      %s32 = sadd.s32 1, %s23
      %s33 = scalar_select %p30, %s32, %s23
      %p34 = scmp.ge.s32.totalorder %s33, 2
      %s35 = scalar_select %p34, 0, %s33
      %s36 = ssub.s32 %s23, %s35
      %s37 = ssub.s32 %s24, %s31
      %s38 = sor.u32 %s36, %s37
      %p39 = scmp.eq.s32.totalorder %s38, 0
      %s41 = sadd.s32 %s40, 1
      %s42 = scalar_select %p39, %s40, %s41
      %p45 = pneg %p39
      %p46 = scmp.eq.s32.totalorder %s16, 1
      %p47 = por %p45, %p46
      %p48 = scmp.ne.s32.totalorder %s40, %s43
      %p49 = scmp.eq.s32.totalorder %s16, 0
      %p50 = por %p48, %p49
      %p51 = scmp.ne.s32.totalorder %s40, %s43
      %p52 = scmp.eq.s32.totalorder %s21, 1
      %p53 = por %p51, %p52
      %p54 = scmp.ne.s32.totalorder %s43, %s44
      %p55 = scmp.eq.s32.totalorder %s21, 0
      %p56 = por %p54, %p55
      %p57 = scmp.ne.s32.totalorder %s43, %s44
      %p58 = scmp.eq.s32.totalorder %s22, 1
      %p59 = por %p57, %p58
      %p61 = scmp.ne.s32.totalorder %s44, %s60
      %p62 = scmp.eq.s32.totalorder %s22, 0
      %p63 = por %p61, %p62
      %s65 = sadd.s32 %s64, 1
      %p68 = scmp.eq.s32.totalorder %s16, 1
      %p69 = scmp.ne.s32.totalorder %s64, %s66
      %p70 = scmp.eq.s32.totalorder %s16, 0
      %p71 = por %p69, %p70
      %p72 = scmp.ne.s32.totalorder %s64, %s66
      %p73 = scmp.eq.s32.totalorder %s21, 1
      %p74 = por %p72, %p73
      %p75 = scmp.ne.s32.totalorder %s66, %s67
      %p76 = scmp.eq.s32.totalorder %s21, 0
      %p77 = por %p75, %p76
      %p78 = scmp.ne.s32.totalorder %s66, %s67
      %p79 = scmp.eq.s32.totalorder %s22, 1
      %p80 = por %p78, %p79
      %p82 = scmp.ne.s32.totalorder %s67, %s81
      %p83 = scmp.eq.s32.totalorder %s22, 0
      %p84 = por %p82, %p83
      %s86 = sadd.s32 %s85, 1
      %p89 = scmp.eq.s32.totalorder %s16, 1
      %p90 = scmp.ne.s32.totalorder %s85, %s87
      %p91 = scmp.eq.s32.totalorder %s16, 0
      %p92 = por %p90, %p91
      %p93 = scmp.ne.s32.totalorder %s85, %s87
      %p94 = scmp.eq.s32.totalorder %s21, 1
      %p95 = por %p93, %p94
      %p96 = scmp.ne.s32.totalorder %s87, %s88
      %p97 = scmp.eq.s32.totalorder %s21, 0
      %p98 = por %p96, %p97
      %p99 = scmp.ne.s32.totalorder %s87, %s88
      %p100 = scmp.eq.s32.totalorder %s22, 1
      %p101 = por %p99, %p100
      %p103 = scmp.ne.s32.totalorder %s88, %s102
      %p104 = scmp.eq.s32.totalorder %s22, 0
      %p105 = por %p103, %p104
      %s107 = sadd.s32 %s106, 1
      %p110 = scmp.eq.s32.totalorder %s16, 1
      %p111 = scmp.ne.s32.totalorder %s106, %s108
      %p112 = scmp.eq.s32.totalorder %s16, 0
      %p113 = por %p111, %p112
      %p114 = scmp.ne.s32.totalorder %s106, %s108
      %p115 = scmp.eq.s32.totalorder %s21, 1
      %p116 = por %p114, %p115
      %p117 = scmp.ne.s32.totalorder %s108, %s109
      %p118 = scmp.eq.s32.totalorder %s21, 0
      %p119 = por %p117, %p118
      %p120 = scmp.ne.s32.totalorder %s108, %s109
      %p121 = scmp.eq.s32.totalorder %s22, 1
      %p122 = por %p120, %p121
      %p124 = scmp.ne.s32.totalorder %s109, %s123
      %p125 = scmp.eq.s32.totalorder %s22, 0
      %p126 = por %p124, %p125
      %s128 = sadd.s32 %s127, 1
      %p131 = scmp.eq.s32.totalorder %s16, 1
      %p132 = scmp.ne.s32.totalorder %s127, %s129
      %p133 = scmp.eq.s32.totalorder %s16, 0
      %p134 = por %p132, %p133
      %p135 = scmp.ne.s32.totalorder %s127, %s129
      %p136 = scmp.eq.s32.totalorder %s21, 1
      %p137 = por %p135, %p136
      %p138 = scmp.ne.s32.totalorder %s129, %s130
      %p139 = scmp.eq.s32.totalorder %s21, 0
      %p140 = por %p138, %p139
      %p141 = scmp.ne.s32.totalorder %s129, %s130
      %p142 = scmp.eq.s32.totalorder %s22, 1
      %p143 = por %p141, %p142
      %p145 = scmp.ne.s32.totalorder %s130, %s144
      %p146 = scmp.eq.s32.totalorder %s22, 0
      %p147 = por %p145, %p146
      %s149 = sadd.s32 %s148, 1
      %p152 = scmp.eq.s32.totalorder %s16, 1
      %p153 = scmp.ne.s32.totalorder %s148, %s150
      %p154 = scmp.eq.s32.totalorder %s16, 0
      %p155 = por %p153, %p154
      %p156 = scmp.ne.s32.totalorder %s148, %s150
      %p157 = scmp.eq.s32.totalorder %s21, 1
      %p158 = por %p156, %p157
      %p159 = scmp.ne.s32.totalorder %s150, %s151
      %p160 = scmp.eq.s32.totalorder %s21, 0
      %p161 = por %p159, %p160
      %p162 = scmp.ne.s32.totalorder %s150, %s151
      %p163 = scmp.eq.s32.totalorder %s22, 1
      %p164 = por %p162, %p163
      %p166 = scmp.ne.s32.totalorder %s151, %s165
      %p167 = scmp.eq.s32.totalorder %s22, 0
      %p168 = por %p166, %p167
      %s170 = sadd.s32 %s169, 1
      %p173 = scmp.eq.s32.totalorder %s16, 1
      %p174 = scmp.ne.s32.totalorder %s169, %s171
      %p175 = scmp.eq.s32.totalorder %s16, 0
      %p176 = por %p174, %p175
      %p177 = scmp.ne.s32.totalorder %s169, %s171
      %p178 = scmp.eq.s32.totalorder %s21, 1
      %p179 = por %p177, %p178
      %p180 = scmp.ne.s32.totalorder %s171, %s172
      %p181 = scmp.eq.s32.totalorder %s21, 0
      %p182 = por %p180, %p181
      %p183 = scmp.ne.s32.totalorder %s171, %s172
      %p184 = scmp.eq.s32.totalorder %s22, 1
      %p185 = por %p183, %p184
      %p187 = scmp.ne.s32.totalorder %s172, %s186
      %p188 = scmp.eq.s32.totalorder %s22, 0
      %p189 = por %p187, %p188
      %s190 = ssub.s32 %s23, %s35
      %s191 = ssub.s32 %s24, %s31
      %s192 = sor.u32 %s190, %s191
      %p193 = scmp.eq.s32.totalorder %s192, 0
      %s195 = sadd.s32 %s194, 1
      %s196 = scalar_select %p193, %s194, %s195
      %p199 = pneg %p193
      %p200 = scmp.eq.s32.totalorder %s16, 1
      %p201 = por %p199, %p200
      %p202 = scmp.ne.s32.totalorder %s194, %s197
      %p203 = scmp.eq.s32.totalorder %s16, 0
      %p204 = por %p202, %p203
      %p205 = scmp.ne.s32.totalorder %s194, %s197
      %p206 = scmp.eq.s32.totalorder %s21, 1
      %p207 = por %p205, %p206
      %p208 = scmp.ne.s32.totalorder %s197, %s198
      %p209 = scmp.eq.s32.totalorder %s21, 0
      %p210 = por %p208, %p209
      %p211 = scmp.ne.s32.totalorder %s197, %s198
      %p212 = scmp.eq.s32.totalorder %s22, 1
      %p213 = por %p211, %p212
      %p215 = scmp.ne.s32.totalorder %s198, %s214
      %p216 = scmp.eq.s32.totalorder %s22, 0
      %p217 = por %p215, %p216
      %p218 = scmp.le.s32.totalorder 1, %s16
      %p219 = scmp.lt.s32.totalorder %s16, 3
      %p220 = pnand %p218, %p219
      %p221 = pneg %p220
      // Predicated region
      $region9: #{composed_model_forward.1} parent=5 // pred_check
        _
      $region10: #{composed_model_forward.1} parent=5 // pred_check_branch
        %223 = sbr.rel (%p220) target = $region12
      $region11: #{composed_model_forward.1} parent=5 // pred_region
        %s224 = ssub.s32 %s16, 1
        // Predicated region
        $region13: #{composed_model_forward.1} parent=11 // pred_check
          %p225 = pneg %p77
        $region14: #{composed_model_forward.1} parent=11 // pred_check_branch
          %227 = sbr.rel (%p225) target = $region16
        $region15: #{composed_model_forward.1} parent=11 // pred_region
          _
        $region16: #{composed_model_forward.1} parent=11 // pred_fallthru
          _
        // Predicated region
        $region17: #{composed_model_forward.1} parent=11 // pred_check
          %p228 = pneg %p98
        $region18: #{composed_model_forward.1} parent=11 // pred_check_branch
          %230 = sbr.rel (%p228) target = $region20
        $region19: #{composed_model_forward.1} parent=11 // pred_region
          _
        $region20: #{composed_model_forward.1} parent=11 // pred_fallthru
          _
        // Predicated region
        $region21: #{composed_model_forward.1} parent=11 // pred_check
          %p231 = pneg %p119
        $region22: #{composed_model_forward.1} parent=11 // pred_check_branch
          %233 = sbr.rel (%p231) target = $region24
        $region23: #{composed_model_forward.1} parent=11 // pred_region
          _
        $region24: #{composed_model_forward.1} parent=11 // pred_fallthru
          _
        // Predicated region
        $region25: #{composed_model_forward.1} parent=11 // pred_check
          %p234 = pneg %p140
        $region26: #{composed_model_forward.1} parent=11 // pred_check_branch
          %236 = sbr.rel (%p234) target = $region28
        $region27: #{composed_model_forward.1} parent=11 // pred_region
          _
        $region28: #{composed_model_forward.1} parent=11 // pred_fallthru
          _
        // Predicated region
        $region29: #{composed_model_forward.1} parent=11 // pred_check
          %p237 = pneg %p161
        $region30: #{composed_model_forward.1} parent=11 // pred_check_branch
          %239 = sbr.rel (%p237) target = $region32
        $region31: #{composed_model_forward.1} parent=11 // pred_region
          _
        $region32: #{composed_model_forward.1} parent=11 // pred_fallthru
          _
        // Predicated region
        $region33: #{composed_model_forward.1} parent=11 // pred_check
          %p240 = pneg %p182
        $region34: #{composed_model_forward.1} parent=11 // pred_check_branch
          %242 = sbr.rel (%p240) target = $region36
        $region35: #{composed_model_forward.1} parent=11 // pred_region
          _
        $region36: #{composed_model_forward.1} parent=11 // pred_fallthru
          _
      $region12: #{composed_model_forward.1} parent=5 // pred_fallthru
        _
      %p243 = scmp.lt.s32.totalorder %s16, 2
      // Predicated region
      $region37: #{composed_model_forward.1} parent=5 // pred_check
        %p244 = pneg %p243
      $region38: #{composed_model_forward.1} parent=5 // pred_check_branch
        %246 = sbr.rel (%p244) target = $region40
      $region39: #{composed_model_forward.1} parent=5 // pred_region
        // Predicated region
        $region41: #{composed_model_forward.1} parent=39 // pred_check
          %p247 = pneg %p50
        $region42: #{composed_model_forward.1} parent=39 // pred_check_branch
          %249 = sbr.rel (%p247) target = $region44
        $region43: #{composed_model_forward.1} parent=39 // pred_region
          %p250 = scmp.lt.s32.totalorder %s23, 1
          %s251 = scalar_select %p250, %s23, 1
          %p252 = scmp.lt.s32.totalorder %s24, 0
          %s253 = scalar_select %p252, %s24, 0
          %s254 = smul.addr %s253, 8
          %s255 = smul.addr %s251, 8
          %s256 = sadd.s32 %s254, %s255
          %s257 = smul.addr %s256, 4
          %s258 = scalar_lea.vmem %s0, %s257
        $region44: #{composed_model_forward.1} parent=39 // pred_fallthru
          _
      $region40: #{composed_model_forward.1} parent=5 // pred_fallthru
        _
      %p259 = scmp.le.s32.totalorder 1, %s16
      %p260 = scmp.lt.s32.totalorder %s16, 3
      %p261 = pnand %p259, %p260
      %p262 = pneg %p261
      // Predicated region
      $region45: #{composed_model_forward.1} parent=5 // pred_check
        _
      $region46: #{composed_model_forward.1} parent=5 // pred_check_branch
        %264 = sbr.rel (%p261) target = $region48
      $region47: #{composed_model_forward.1} parent=5 // pred_region
        %s265 = ssub.s32 %s16, 1
        %p266 = scmp.lt.s32.totalorder %s25, 1
        %s267 = scalar_select %p266, %s25, 1
        %p268 = scmp.lt.s32.totalorder %s26, 0
        %s269 = scalar_select %p268, %s26, 0
        %s270 = smul.addr %s269, 8
        %s271 = smul.addr %s267, 8
        %s272 = sadd.s32 %s270, %s271
        %s273 = smul.addr %s272, 4
        %s274 = scalar_lea.vmem %s0, %s273
        %p275 = pneg %p56
        %p276 = pneg %p53
        %p277 = pneg %p77
        %p278 = pneg %p74
        %p279 = pneg %p98
        %p280 = pneg %p95
        %p281 = pneg %p119
        %p282 = pneg %p116
        %p283 = pneg %p140
        %p284 = pneg %p137
        %p285 = pneg %p161
        %p286 = pneg %p158
        %p287 = pneg %p182
        %p288 = pneg %p179
        %p289 = pneg %p210
        %p290 = pneg %p207
        %s291 = sand.u32 %s197, 1
        %s292 = scalar_lea.sflag [#allocation4], %s291
        %s293 = sand.u32 %s197, 1
        %s294 = smul.addr %s293, 64
        %s295 = scalar_lea.vmem [#allocation3], %s294
        %p296 = scmp.lt.s32.totalorder %s25, 1
        %s297 = scalar_select %p296, %s25, 1
        %p298 = scmp.lt.s32.totalorder %s26, 0
        %s299 = scalar_select %p298, %s26, 0
        %s300 = smul.addr %s299, 8
        %s301 = smul.addr %s297, 8
        %s302 = sadd.s32 %s300, %s301
        %s303 = smul.addr %s302, 4
        %s304 = scalar_lea.vmem %s0, %s303
        %s305 = smul.u32 2, %s26
        %v307 = vld [vmem:[%s304] sm:$0xf]
        %v308 = vld [vmem:[%s304 + $0x4] sm:$0xf]
        %v309 = vld [vmem:[%s304 + $0x8] sm:$0xf]
        %v310 = vld [vmem:[%s304 + $0xc] sm:$0xf]
        %v311 = vld [vmem:[%s304 + $0x10] sm:$0xf]
        %v312 = vld [vmem:[%s304 + $0x14] sm:$0xf]
        %v313 = vld [vmem:[%s304 + $0x18] sm:$0xf]
        %v314 = vld [vmem:[%s304 + $0x1c] sm:$0xf]
        %v315 = vld [vmem:[%s5] sm:$0x3]
        %v316 = vld [vmem:[%s4] sm:$0xf]
        %v317 = vld [vmem:[%s1] sm:$0xf]
        %v318 = vld [vmem:[%s1 + $0x4] sm:$0xf]
        %v319 = vld [vmem:[%s1 + $0x8] sm:$0xf]
        %v320 = vld [vmem:[%s1 + $0xc] sm:$0xf]
        %v321 = vld [vmem:[%s1 + $0x10] sm:$0xf]
        %v322 = vld [vmem:[%s1 + $0x14] sm:$0xf]
        %v323 = vld [vmem:[%s1 + $0x18] sm:$0xf]
        %v324 = vld [vmem:[%s1 + $0x1c] sm:$0xf]
        %v325 = vld [vmem:[%s1 + $0x20] sm:$0xf]
        %v326 = vld [vmem:[%s1 + $0x24] sm:$0xf]
        %v327 = vld [vmem:[%s1 + $0x28] sm:$0xf]
        %v328 = vld [vmem:[%s1 + $0x2c] sm:$0xf]
        %v329 = vld [vmem:[%s1 + $0x30] sm:$0xf]
        %v330 = vld [vmem:[%s1 + $0x34] sm:$0xf]
        %v331 = vld [vmem:[%s1 + $0x38] sm:$0xf]
        %v332 = vld [vmem:[%s1 + $0x3c] sm:$0xf]
        %v333 = vld [vmem:[%s1 + $0x40] sm:$0xf]
        %v334 = vld [vmem:[%s1 + $0x44] sm:$0xf]
        %v335 = vld [vmem:[%s1 + $0x48] sm:$0xf]
        %v336 = vld [vmem:[%s1 + $0x4c] sm:$0xf]
        %v337 = vld [vmem:[%s1 + $0x50] sm:$0xf]
        %v338 = vld [vmem:[%s1 + $0x54] sm:$0xf]
        %v339 = vld [vmem:[%s1 + $0x58] sm:$0xf]
        %v340 = vld [vmem:[%s1 + $0x5c] sm:$0xf]
        %v341 = vld [vmem:[%s1 + $0x60] sm:$0xf]
        %v342 = vld [vmem:[%s1 + $0x64] sm:$0xf]
        %v343 = vld [vmem:[%s1 + $0x68] sm:$0xf]
        %v371 = vunpack.c.l.b16 %v317
        %v372 = vunpack.c.l.b16 %v318
        %v373 = vunpack.c.l.b16 %v319
        %v374 = vunpack.c.l.b16 %v320
        %v375 = vunpack.c.l.b16 %v321
        %v376 = vunpack.c.l.b16 %v322
        %v377 = vunpack.c.l.b16 %v323
        %v378 = vunpack.c.l.b16 %v324
        %v379 = vunpack.c.l.b16 %v325
        %v380 = vunpack.c.l.b16 %v326
        %v381 = vunpack.c.l.b16 %v327
        %v382 = vunpack.c.l.b16 %v328
        %v383 = vunpack.c.l.b16 %v329
        %v384 = vunpack.c.l.b16 %v330
        %v385 = vunpack.c.l.b16 %v331
        %v386 = vunpack.c.l.b16 %v332
        %v387 = vunpack.c.l.b16 %v333
        %v388 = vunpack.c.l.b16 %v334
        %v389 = vunpack.c.l.b16 %v335
        %v390 = vunpack.c.l.b16 %v336
        %v391 = vunpack.c.l.b16 %v337
        %v392 = vunpack.c.l.b16 %v338
        %v393 = vunpack.c.l.b16 %v339
        %v394 = vunpack.c.l.b16 %v340
        %v395 = vunpack.c.l.b16 %v341
        %v396 = vunpack.c.l.b16 %v342
        %v397 = vunpack.c.l.b16 %v343
        %v398 = vpack.c.b16 %v372, %v371
        %v399 = vpack.c.b16 %v374, %v373
        %v400 = vpack.c.b16 %v376, %v375
        %v401 = vpack.c.b16 %v378, %v377
        %v402 = vpack.c.b16 %v380, %v379
        %v403 = vpack.c.b16 %v382, %v381
        %v404 = vpack.c.b16 %v384, %v383
        %v405 = vpack.c.b16 %v386, %v385
        %v406 = vpack.c.b16 %v388, %v387
        %v407 = vpack.c.b16 %v390, %v389
        %v408 = vpack.c.b16 %v392, %v391
        %v409 = vpack.c.b16 %v394, %v393
        %v410 = vpack.c.b16 %v396, %v395
        %v411 = vpack.c.b16 %v397, %v397
        %v420 = vunpack.c.l.b16 %v307
        %v421 = vunpack.c.l.b16 %v308
        %v422 = vunpack.c.l.b16 %v309
        %v423 = vunpack.c.l.b16 %v310
        %v424 = vunpack.c.l.b16 %v311
        %v425 = vunpack.c.l.b16 %v312
        %v426 = vunpack.c.l.b16 %v313
        %v427 = vunpack.c.l.b16 %v314
        %v428 = vpack.c.b16 %v421, %v420
        %v429 = vpack.c.b16 %v423, %v422
        %v430 = vpack.c.b16 %v425, %v424
        %v431 = vpack.c.b16 %v427, %v426
        %vm436 = vcmask 523264
        %v438 = vsel %vm436, %v398, 0
        %v441 = vsel %vm436, %v399, 0
        %v444 = vsel %vm436, %v400, 0
        %v447 = vsel %vm436, %v401, 0
        %v450 = vsel %vm436, %v402, 0
        %v453 = vsel %vm436, %v403, 0
        %v456 = vsel %vm436, %v404, 0
        %v459 = vsel %vm436, %v405, 0
        %v462 = vsel %vm436, %v406, 0
        %v465 = vsel %vm436, %v407, 0
        %v468 = vsel %vm436, %v408, 0
        %v471 = vsel %vm436, %v409, 0
        %v474 = vsel %vm436, %v410, 0
        %v477 = vsel %vm436, %v411, 0
        %479 = vmatprep.subr.bf16.mxu0 0
        %480 = vmatpush1.bf16.msra.mxu0 0
        %481 = vmatprep.subr.bf16.mxu0 0
        %482 = vmatpush1.bf16.msra.mxu0 0
        %483 = vmatprep.subr.bf16.mxu0 0
        %484 = vmatpush1.bf16.msra.mxu0 0
        %485 = vmatprep.subr.bf16.mxu0 0
        %486 = vmatpush1.bf16.msra.mxu0 0
        %487 = vmatprep.subr.bf16.mxu0 0
        %488 = vmatpush1.bf16.msra.mxu0 %v431
        %489 = vmatprep.subr.bf16.mxu0 0
        %490 = vmatpush1.bf16.msra.mxu0 %v430
        %491 = vmatprep.subr.bf16.mxu0 0
        %492 = vmatpush1.bf16.msra.mxu0 %v429
        %493 = vmatprep.subr.bf16.mxu0 0
        %494 = vmatpush1.bf16.msra.mxu0 %v428
        %495 = vmatprep.subr.bf16.mxu0 0
        %496 = vmatpush2.bf16.msra.mxu0 0
        %497 = vmatprep.subr.bf16.mxu0 0
        %498 = vmatpush2.bf16.msra.mxu0 0
        %499 = vmatprep.subr.bf16.mxu0 0
        %500 = vmatpush2.bf16.msra.mxu0 0
        %501 = vmatprep.subr.bf16.mxu0 0
        %502 = vmatpush2.bf16.msra.mxu0 0
        %503 = vmatprep.subr.bf16.mxu0 0
        %504 = vmatpush2.bf16.msra.mxu0 0
        %505 = vmatprep.subr.bf16.mxu0 0
        %506 = vmatpush2.bf16.msra.mxu0 0
        %507 = vmatprep.subr.bf16.mxu0 0
        %508 = vmatpush2.bf16.msra.mxu0 0
        %509 = vmatprep.subr.bf16.mxu0 0
        %510 = vmatpush2.bf16.msra.mxu0 0
        %511 = vmatprep.mubr.bf16.mxu0 0
        %512 = vmatmul.mubr.bf16.gmra.mxu0 %v438
        %v513 = vpop.f32.mrf.mxu0
        %v514 = vadd.f32 0.0, %v513
        %v515 = vpop.f32.mrf.mxu0
        %v516 = vpop.f32.mrf.mxu0
        %v517 = vadd.f32 0.0, %v516
        %v518 = vpop.f32.mrf.mxu0
        %519 = vmatprep.mubr.bf16.mxu0 0
        %520 = vmatmul.mubr.bf16.gmra.mxu0 %v441
        %v521 = vpop.f32.mrf.mxu0
        %v522 = vadd.f32 0.0, %v521
        %v523 = vpop.f32.mrf.mxu0
        %v524 = vpop.f32.mrf.mxu0
        %v525 = vadd.f32 0.0, %v524
        %v526 = vpop.f32.mrf.mxu0
        %527 = vmatprep.mubr.bf16.mxu0 0
        %528 = vmatmul.mubr.bf16.gmra.mxu0 %v444
        %v529 = vpop.f32.mrf.mxu0
        %v530 = vadd.f32 0.0, %v529
        %v531 = vpop.f32.mrf.mxu0
        %v532 = vpop.f32.mrf.mxu0
        %v533 = vadd.f32 0.0, %v532
        %v534 = vpop.f32.mrf.mxu0
        %535 = vmatprep.mubr.bf16.mxu0 0
        %536 = vmatmul.mubr.bf16.gmra.mxu0 %v447
        %v537 = vpop.f32.mrf.mxu0
        %v538 = vadd.f32 0.0, %v537
        %v539 = vpop.f32.mrf.mxu0
        %v540 = vpop.f32.mrf.mxu0
        %v541 = vadd.f32 0.0, %v540
        %v542 = vpop.f32.mrf.mxu0
        %543 = vmatprep.mubr.bf16.mxu0 0
        %544 = vmatmul.mubr.bf16.gmra.mxu0 %v450
        %v545 = vpop.f32.mrf.mxu0
        %v546 = vadd.f32 0.0, %v545
        %v547 = vpop.f32.mrf.mxu0
        %v548 = vpop.f32.mrf.mxu0
        %v549 = vadd.f32 0.0, %v548
        %v550 = vpop.f32.mrf.mxu0
        %551 = vmatprep.mubr.bf16.mxu0 0
        %552 = vmatmul.mubr.bf16.gmra.mxu0 %v453
        %v553 = vpop.f32.mrf.mxu0
        %v554 = vadd.f32 0.0, %v553
        %v555 = vpop.f32.mrf.mxu0
        %v556 = vpop.f32.mrf.mxu0
        %v557 = vadd.f32 0.0, %v556
        %v558 = vpop.f32.mrf.mxu0
        %559 = vmatprep.mubr.bf16.mxu0 0
        %560 = vmatmul.mubr.bf16.gmra.mxu0 %v456
        %v561 = vpop.f32.mrf.mxu0
        %v562 = vadd.f32 0.0, %v561
        %v563 = vpop.f32.mrf.mxu0
        %v564 = vpop.f32.mrf.mxu0
        %v565 = vadd.f32 0.0, %v564
        %v566 = vpop.f32.mrf.mxu0
        %567 = vmatprep.mubr.bf16.mxu0 0
        %568 = vmatmul.mubr.bf16.gmra.mxu0 %v459
        %v569 = vpop.f32.mrf.mxu0
        %v570 = vadd.f32 0.0, %v569
        %v571 = vpop.f32.mrf.mxu0
        %v572 = vpop.f32.mrf.mxu0
        %v573 = vadd.f32 0.0, %v572
        %v574 = vpop.f32.mrf.mxu0
        %575 = vmatprep.mubr.bf16.mxu0 0
        %576 = vmatmul.mubr.bf16.gmra.mxu0 %v462
        %v577 = vpop.f32.mrf.mxu0
        %v578 = vadd.f32 0.0, %v577
        %v579 = vpop.f32.mrf.mxu0
        %v580 = vpop.f32.mrf.mxu0
        %v581 = vadd.f32 0.0, %v580
        %v582 = vpop.f32.mrf.mxu0
        %583 = vmatprep.mubr.bf16.mxu0 0
        %584 = vmatmul.mubr.bf16.gmra.mxu0 %v465
        %v585 = vpop.f32.mrf.mxu0
        %v586 = vadd.f32 0.0, %v585
        %v587 = vpop.f32.mrf.mxu0
        %v588 = vpop.f32.mrf.mxu0
        %v589 = vadd.f32 0.0, %v588
        %v590 = vpop.f32.mrf.mxu0
        %591 = vmatprep.mubr.bf16.mxu0 0
        %592 = vmatmul.mubr.bf16.gmra.mxu0 %v468
        %v593 = vpop.f32.mrf.mxu0
        %v594 = vadd.f32 0.0, %v593
        %v595 = vpop.f32.mrf.mxu0
        %v596 = vpop.f32.mrf.mxu0
        %v597 = vadd.f32 0.0, %v596
        %v598 = vpop.f32.mrf.mxu0
        %599 = vmatprep.mubr.bf16.mxu0 0
        %600 = vmatmul.mubr.bf16.gmra.mxu0 %v471
        %v601 = vpop.f32.mrf.mxu0
        %v602 = vadd.f32 0.0, %v601
        %v603 = vpop.f32.mrf.mxu0
        %v604 = vpop.f32.mrf.mxu0
        %v605 = vadd.f32 0.0, %v604
        %v606 = vpop.f32.mrf.mxu0
        %607 = vmatprep.mubr.bf16.mxu0 0
        %608 = vmatmul.mubr.bf16.gmra.mxu0 %v474
        %v609 = vpop.f32.mrf.mxu0
        %v610 = vadd.f32 0.0, %v609
        %v611 = vpop.f32.mrf.mxu0
        %v612 = vpop.f32.mrf.mxu0
        %v613 = vadd.f32 0.0, %v612
        %v614 = vpop.f32.mrf.mxu0
        %615 = vmatprep.mubr.bf16.mxu0 0
        %616 = vmatmul.mubr.bf16.gmra.mxu0 %v477
        %v617 = vpop.f32.mrf.mxu0
        %v618 = vadd.f32 0.0, %v617
        %v619 = vpop.f32.mrf.mxu0
        %v620 = vpop.f32.mrf.mxu0
        %v621 = vpop.f32.mrf.mxu0
        %622 = vdwg.mxu0
        %v623 = vld [vmem:[%s2] sm:$0xff]
        %v624 = vld [vmem:[%s2 + $0x8] sm:$0xff]
        %v625 = vld [vmem:[%s2 + $0x10] sm:$0xff]
        %v626 = vld [vmem:[%s2 + $0x18] sm:$0xff]
        %v627 = vld [vmem:[%s2 + $0x20] sm:$0xff]
        %v628 = vld [vmem:[%s2 + $0x28] sm:$0xff]
        %v629 = vld [vmem:[%s2 + $0x30] sm:$0xff]
        %v630 = vld [vmem:[%s2 + $0x38] sm:$0xff]
        %v631 = vld [vmem:[%s2 + $0x40] sm:$0xff]
        %v632 = vld [vmem:[%s2 + $0x48] sm:$0xff]
        %v633 = vld [vmem:[%s2 + $0x50] sm:$0xff]
        %v634 = vld [vmem:[%s2 + $0x58] sm:$0xff]
        %v635 = vld [vmem:[%s2 + $0x60] sm:$0xff]
        %v636 = vld [vmem:[%s2 + $0x68] sm:$0xff]
        %v637 = vld [vmem:[%s2 + $0x70] sm:$0xff]
        %v638 = vld [vmem:[%s2 + $0x78] sm:$0xff]
        %v639 = vld [vmem:[%s2 + $0x80] sm:$0xff]
        %v640 = vld [vmem:[%s2 + $0x88] sm:$0xff]
        %v641 = vld [vmem:[%s2 + $0x90] sm:$0xff]
        %643 = vset.pattern.permute.xlu0 0
        %644 = vperm.xlu0 %643, %v623
        %v645 = vpop.permute.xlu0 %644
        %648 = vset.pattern.permute.xlu0 0
        %649 = vperm.xlu0 %648, %v624
        %v650 = vpop.permute.xlu0 %649
        %653 = vset.pattern.permute.xlu0 0
        %654 = vperm.xlu0 %653, %v625
        %v655 = vpop.permute.xlu0 %654
        %658 = vset.pattern.permute.xlu0 0
        %659 = vperm.xlu0 %658, %v626
        %v660 = vpop.permute.xlu0 %659
        %663 = vset.pattern.permute.xlu0 0
        %664 = vperm.xlu0 %663, %v627
        %v665 = vpop.permute.xlu0 %664
        %668 = vset.pattern.permute.xlu0 0
        %669 = vperm.xlu0 %668, %v628
        %v670 = vpop.permute.xlu0 %669
        %673 = vset.pattern.permute.xlu0 0
        %674 = vperm.xlu0 %673, %v629
        %v675 = vpop.permute.xlu0 %674
        %678 = vset.pattern.permute.xlu0 0
        %679 = vperm.xlu0 %678, %v630
        %v680 = vpop.permute.xlu0 %679
        %683 = vset.pattern.permute.xlu0 0
        %684 = vperm.xlu0 %683, %v631
        %v685 = vpop.permute.xlu0 %684
        %688 = vset.pattern.permute.xlu0 0
        %689 = vperm.xlu0 %688, %v632
        %v690 = vpop.permute.xlu0 %689
        %693 = vset.pattern.permute.xlu0 0
        %694 = vperm.xlu0 %693, %v633
        %v695 = vpop.permute.xlu0 %694
        %698 = vset.pattern.permute.xlu0 0
        %699 = vperm.xlu0 %698, %v634
        %v700 = vpop.permute.xlu0 %699
        %703 = vset.pattern.permute.xlu0 0
        %704 = vperm.xlu0 %703, %v635
        %v705 = vpop.permute.xlu0 %704
        %708 = vset.pattern.permute.xlu0 0
        %709 = vperm.xlu0 %708, %v636
        %v710 = vpop.permute.xlu0 %709
        %713 = vset.pattern.permute.xlu0 0
        %714 = vperm.xlu0 %713, %v637
        %v715 = vpop.permute.xlu0 %714
        %718 = vset.pattern.permute.xlu0 0
        %719 = vperm.xlu0 %718, %v638
        %v720 = vpop.permute.xlu0 %719
        %723 = vset.pattern.permute.xlu0 0
        %724 = vperm.xlu0 %723, %v639
        %v725 = vpop.permute.xlu0 %724
        %728 = vset.pattern.permute.xlu0 0
        %729 = vperm.xlu0 %728, %v640
        %v730 = vpop.permute.xlu0 %729
        %733 = vset.pattern.permute.xlu0 0
        %734 = vperm.xlu0 %733, %v641
        %v735 = vpop.permute.xlu0 %734
        %v737 = vadd.f32 %v514, %v645
        %v738 = vadd.f32 %v517, %v650
        %v739 = vadd.f32 %v522, %v655
        %v740 = vadd.f32 %v525, %v660
        %v741 = vadd.f32 %v530, %v665
        %v742 = vadd.f32 %v533, %v670
        %v743 = vadd.f32 %v538, %v675
        %v744 = vadd.f32 %v541, %v680
        %v745 = vadd.f32 %v546, %v685
        %v746 = vadd.f32 %v549, %v690
        %v747 = vadd.f32 %v554, %v695
        %v748 = vadd.f32 %v557, %v700
        %v749 = vadd.f32 %v562, %v705
        %v750 = vadd.f32 %v565, %v710
        %v751 = vadd.f32 %v570, %v715
        %v752 = vadd.f32 %v573, %v720
        %v753 = vadd.f32 %v578, %v725
        %v754 = vadd.f32 %v581, %v730
        %v755 = vadd.f32 %v586, %v735
        %v756 = vmax.f32 %v737, 0.0
        %v757 = vmax.f32 %v738, 0.0
        %v758 = vmax.f32 %v739, 0.0
        %v759 = vmax.f32 %v740, 0.0
        %v760 = vmax.f32 %v741, 0.0
        %v761 = vmax.f32 %v742, 0.0
        %v762 = vmax.f32 %v743, 0.0
        %v763 = vmax.f32 %v744, 0.0
        %v764 = vmax.f32 %v745, 0.0
        %v765 = vmax.f32 %v746, 0.0
        %v766 = vmax.f32 %v747, 0.0
        %v767 = vmax.f32 %v748, 0.0
        %v768 = vmax.f32 %v749, 0.0
        %v769 = vmax.f32 %v750, 0.0
        %v770 = vmax.f32 %v751, 0.0
        %v771 = vmax.f32 %v752, 0.0
        %v772 = vmax.f32 %v753, 0.0
        %v773 = vmax.f32 %v754, 0.0
        %v774 = vmax.f32 %v755, 0.0
        %v775 = vpack.c.bf16 %v594, %v589
        %v776 = vpack.c.bf16 %v602, %v597
        %v777 = vpack.c.bf16 %v610, %v605
        %v778 = vpack.c.bf16 %v618, %v613
        %v779 = vld [vmem:[%s3] sm:$0xf]
        %v780 = vpack.c.bf16 %v757, %v756
        %v781 = vpack.c.bf16 %v759, %v758
        %v782 = vpack.c.bf16 %v761, %v760
        %v783 = vpack.c.bf16 %v763, %v762
        %v784 = vpack.c.bf16 %v765, %v764
        %v785 = vpack.c.bf16 %v767, %v766
        %v786 = vpack.c.bf16 %v769, %v768
        %v787 = vpack.c.bf16 %v771, %v770
        %v788 = vpack.c.bf16 %v773, %v772
        %v789 = vpack.c.bf16 %v774, %v774
        %v792 = vunpack.c.l.s4 1983009808
        %v793 = vunpack.c.0.s8 %v792
        %v794 = vlaneseq
        %v795 = vshrl.u32 %v794, 7
        %v796 = vsub.s32 %v793, %v795
        %v797 = vrot.slane %v779, %v796
        %v798 = vcombine.high %v797, %v797
        %vm800 = vcmask 195584
        %v802 = vsel %vm800, %v798, 0
        %vm804 = vcmask 1043456
        %v806 = vsel %vm804, %v789, 0
        %808 = vmatprep.subr.bf16.mxu0 0
        %809 = vmatpush1.bf16.msra.mxu0 %v787
        %810 = vmatprep.subr.bf16.mxu0 0
        %811 = vmatpush1.bf16.msra.mxu0 %v786
        %812 = vmatprep.subr.bf16.mxu0 0
        %813 = vmatpush1.bf16.msra.mxu0 %v785
        %814 = vmatprep.subr.bf16.mxu0 0
        %815 = vmatpush1.bf16.msra.mxu0 %v784
        %816 = vmatprep.subr.bf16.mxu0 0
        %817 = vmatpush1.bf16.msra.mxu0 %v783
        %818 = vmatprep.subr.bf16.mxu0 0
        %819 = vmatpush1.bf16.msra.mxu0 %v782
        %820 = vmatprep.subr.bf16.mxu0 0
        %821 = vmatpush1.bf16.msra.mxu0 %v781
        %822 = vmatprep.subr.bf16.mxu0 0
        %823 = vmatpush1.bf16.msra.mxu0 %v780
        %824 = vmatprep.subr.bf16.mxu0 0
        %825 = vmatpush2.bf16.msra.mxu0 0
        %826 = vmatprep.subr.bf16.mxu0 0
        %827 = vmatpush2.bf16.msra.mxu0 0
        %828 = vmatprep.subr.bf16.mxu0 0
        %829 = vmatpush2.bf16.msra.mxu0 0
        %830 = vmatprep.subr.bf16.mxu0 0
        %831 = vmatpush2.bf16.msra.mxu0 0
        %832 = vmatprep.subr.bf16.mxu0 0
        %833 = vmatpush2.bf16.msra.mxu0 0
        %834 = vmatprep.subr.bf16.mxu0 0
        %835 = vmatpush2.bf16.msra.mxu0 0
        %836 = vmatprep.subr.bf16.mxu0 0
        %837 = vmatpush2.bf16.msra.mxu0 %v806
        %838 = vmatprep.subr.bf16.mxu0 0
        %839 = vmatpush2.bf16.msra.mxu0 %v788
        %840 = vmatprep.mubr.bf16.mxu0 %v802
        %841 = vmatmul.mubr.bf16.gmra.mxu0 %v797
        %v842 = vpop.f32.mrf.mxu0
        %v843 = vadd.f32 0.0, %v842
        %v844 = vpop.f32.mrf.mxu0
        %v845 = vpop.f32.mrf.mxu0
        %v846 = vpop.f32.mrf.mxu0
        %847 = vdwg.mxu0
        %v848 = vpack.c.bf16 %v843, %v843
        %v849 = vld [vmem:[%s6] sm:$0x3]
        %s850 = scalar_lea.vmem %s6, 2
        %v851 = vld [vmem:[%s850] sm:$0x3]
        %vm852 = vcmask 31744
        %v854 = vsel %vm852, %v776, 0
        %vm856 = vcmask 1041408
        %v858 = vsel %vm856, %v851, 0
        %860 = vmatprep.subr.bf16.mxu0 0
        %861 = vmatpush1.bf16.msra.mxu0 0
        %862 = vmatprep.subr.bf16.mxu0 0
        %863 = vmatpush1.bf16.msra.mxu0 0
        %864 = vmatprep.subr.bf16.mxu0 0
        %865 = vmatpush1.bf16.msra.mxu0 0
        %866 = vmatprep.subr.bf16.mxu0 0
        %867 = vmatpush1.bf16.msra.mxu0 0
        %868 = vmatprep.subr.bf16.mxu0 0
        %869 = vmatpush1.bf16.msra.mxu0 0
        %870 = vmatprep.subr.bf16.mxu0 0
        %871 = vmatpush1.bf16.msra.mxu0 0
        %872 = vmatprep.subr.bf16.mxu0 0
        %873 = vmatpush1.bf16.msra.mxu0 0
        %874 = vmatprep.subr.bf16.mxu0 0
        %875 = vmatpush1.bf16.msra.mxu0 %v858
        %876 = vmatprep.subr.bf16.mxu0 0
        %877 = vmatpush2.bf16.msra.mxu0 0
        %878 = vmatprep.subr.bf16.mxu0 0
        %879 = vmatpush2.bf16.msra.mxu0 0
        %880 = vmatprep.subr.bf16.mxu0 0
        %881 = vmatpush2.bf16.msra.mxu0 0
        %882 = vmatprep.subr.bf16.mxu0 0
        %883 = vmatpush2.bf16.msra.mxu0 0
        %884 = vmatprep.subr.bf16.mxu0 0
        %885 = vmatpush2.bf16.msra.mxu0 0
        %886 = vmatprep.subr.bf16.mxu0 0
        %887 = vmatpush2.bf16.msra.mxu0 0
        %888 = vmatprep.subr.bf16.mxu0 0
        %889 = vmatpush2.bf16.msra.mxu0 0
        %890 = vmatprep.subr.bf16.mxu0 0
        %891 = vmatpush2.bf16.msra.mxu0 0
        %892 = vmatprep.mubr.bf16.mxu0 0
        %893 = vmatmul.mubr.bf16.gmra.mxu0 %v854
        %v894 = vpop.f32.mrf.mxu0
        %v895 = vadd.f32 0.0, %v894
        %v896 = vpop.f32.mrf.mxu0
        %v897 = vpop.f32.mrf.mxu0
        %v898 = vadd.f32 0.0, %v897
        %v899 = vpop.f32.mrf.mxu0
        %900 = vdwg.mxu0
        %v902 = vsel %vm852, %v775, 0
        %v905 = vsel %vm856, %v849, 0
        %907 = vmatprep.subr.bf16.mxu0 0
        %908 = vmatpush1.bf16.msra.mxu0 0
        %909 = vmatprep.subr.bf16.mxu0 0
        %910 = vmatpush1.bf16.msra.mxu0 0
        %911 = vmatprep.subr.bf16.mxu0 0
        %912 = vmatpush1.bf16.msra.mxu0 0
        %913 = vmatprep.subr.bf16.mxu0 0
        %914 = vmatpush1.bf16.msra.mxu0 0
        %915 = vmatprep.subr.bf16.mxu0 0
        %916 = vmatpush1.bf16.msra.mxu0 0
        %917 = vmatprep.subr.bf16.mxu0 0
        %918 = vmatpush1.bf16.msra.mxu0 0
        %919 = vmatprep.subr.bf16.mxu0 0
        %920 = vmatpush1.bf16.msra.mxu0 0
        %921 = vmatprep.subr.bf16.mxu0 0
        %922 = vmatpush1.bf16.msra.mxu0 %v905
        %923 = vmatprep.subr.bf16.mxu0 0
        %924 = vmatpush2.bf16.msra.mxu0 0
        %925 = vmatprep.subr.bf16.mxu0 0
        %926 = vmatpush2.bf16.msra.mxu0 0
        %927 = vmatprep.subr.bf16.mxu0 0
        %928 = vmatpush2.bf16.msra.mxu0 0
        %929 = vmatprep.subr.bf16.mxu0 0
        %930 = vmatpush2.bf16.msra.mxu0 0
        %931 = vmatprep.subr.bf16.mxu0 0
        %932 = vmatpush2.bf16.msra.mxu0 0
        %933 = vmatprep.subr.bf16.mxu0 0
        %934 = vmatpush2.bf16.msra.mxu0 0
        %935 = vmatprep.subr.bf16.mxu0 0
        %936 = vmatpush2.bf16.msra.mxu0 0
        %937 = vmatprep.subr.bf16.mxu0 0
        %938 = vmatpush2.bf16.msra.mxu0 0
        %939 = vmatprep.mubr.bf16.mxu0 0
        %940 = vmatmul.mubr.bf16.gmra.mxu0 %v902
        %v941 = vpop.f32.mrf.mxu0
        %v942 = vadd.f32 %v895, %v941
        %v943 = vpop.f32.mrf.mxu0
        %v944 = vpop.f32.mrf.mxu0
        %v945 = vadd.f32 %v898, %v944
        %v946 = vpop.f32.mrf.mxu0
        %947 = vdwg.mxu0
        %s948 = scalar_lea.vmem %s6, 4
        %v949 = vld [vmem:[%s948] sm:$0x3]
        %v951 = vsel %vm852, %v777, 0
        %v954 = vsel %vm856, %v949, 0
        %956 = vmatprep.subr.bf16.mxu0 0
        %957 = vmatpush1.bf16.msra.mxu0 0
        %958 = vmatprep.subr.bf16.mxu0 0
        %959 = vmatpush1.bf16.msra.mxu0 0
        %960 = vmatprep.subr.bf16.mxu0 0
        %961 = vmatpush1.bf16.msra.mxu0 0
        %962 = vmatprep.subr.bf16.mxu0 0
        %963 = vmatpush1.bf16.msra.mxu0 0
        %964 = vmatprep.subr.bf16.mxu0 0
        %965 = vmatpush1.bf16.msra.mxu0 0
        %966 = vmatprep.subr.bf16.mxu0 0
        %967 = vmatpush1.bf16.msra.mxu0 0
        %968 = vmatprep.subr.bf16.mxu0 0
        %969 = vmatpush1.bf16.msra.mxu0 0
        %970 = vmatprep.subr.bf16.mxu0 0
        %971 = vmatpush1.bf16.msra.mxu0 %v954
        %972 = vmatprep.subr.bf16.mxu0 0
        %973 = vmatpush2.bf16.msra.mxu0 0
        %974 = vmatprep.subr.bf16.mxu0 0
        %975 = vmatpush2.bf16.msra.mxu0 0
        %976 = vmatprep.subr.bf16.mxu0 0
        %977 = vmatpush2.bf16.msra.mxu0 0
        %978 = vmatprep.subr.bf16.mxu0 0
        %979 = vmatpush2.bf16.msra.mxu0 0
        %980 = vmatprep.subr.bf16.mxu0 0
        %981 = vmatpush2.bf16.msra.mxu0 0
        %982 = vmatprep.subr.bf16.mxu0 0
        %983 = vmatpush2.bf16.msra.mxu0 0
        %984 = vmatprep.subr.bf16.mxu0 0
        %985 = vmatpush2.bf16.msra.mxu0 0
        %986 = vmatprep.subr.bf16.mxu0 0
        %987 = vmatpush2.bf16.msra.mxu0 0
        %988 = vmatprep.mubr.bf16.mxu0 0
        %989 = vmatmul.mubr.bf16.gmra.mxu0 %v951
        %v990 = vpop.f32.mrf.mxu0
        %v991 = vadd.f32 0.0, %v990
        %v992 = vpop.f32.mrf.mxu0
        %v993 = vpop.f32.mrf.mxu0
        %v994 = vadd.f32 0.0, %v993
        %v995 = vpop.f32.mrf.mxu0
        %996 = vdwg.mxu0
        %v997 = vadd.f32 %v942, %v991
        %v998 = vadd.f32 %v945, %v994
        %s999 = scalar_lea.vmem %s6, 6
        %v1000 = vld [vmem:[%s999] sm:$0x3]
        %v1002 = vsel %vm852, %v778, 0
        %v1005 = vsel %vm856, %v1000, 0
        %1007 = vmatprep.subr.bf16.mxu0 0
        %1008 = vmatpush1.bf16.msra.mxu0 0
        %1009 = vmatprep.subr.bf16.mxu0 0
        %1010 = vmatpush1.bf16.msra.mxu0 0
        %1011 = vmatprep.subr.bf16.mxu0 0
        %1012 = vmatpush1.bf16.msra.mxu0 0
        %1013 = vmatprep.subr.bf16.mxu0 0
        %1014 = vmatpush1.bf16.msra.mxu0 0
        %1015 = vmatprep.subr.bf16.mxu0 0
        %1016 = vmatpush1.bf16.msra.mxu0 0
        %1017 = vmatprep.subr.bf16.mxu0 0
        %1018 = vmatpush1.bf16.msra.mxu0 0
        %1019 = vmatprep.subr.bf16.mxu0 0
        %1020 = vmatpush1.bf16.msra.mxu0 0
        %1021 = vmatprep.subr.bf16.mxu0 0
        %1022 = vmatpush1.bf16.msra.mxu0 %v1005
        %1023 = vmatprep.subr.bf16.mxu0 0
        %1024 = vmatpush2.bf16.msra.mxu0 0
        %1025 = vmatprep.subr.bf16.mxu0 0
        %1026 = vmatpush2.bf16.msra.mxu0 0
        %1027 = vmatprep.subr.bf16.mxu0 0
        %1028 = vmatpush2.bf16.msra.mxu0 0
        %1029 = vmatprep.subr.bf16.mxu0 0
        %1030 = vmatpush2.bf16.msra.mxu0 0
        %1031 = vmatprep.subr.bf16.mxu0 0
        %1032 = vmatpush2.bf16.msra.mxu0 0
        %1033 = vmatprep.subr.bf16.mxu0 0
        %1034 = vmatpush2.bf16.msra.mxu0 0
        %1035 = vmatprep.subr.bf16.mxu0 0
        %1036 = vmatpush2.bf16.msra.mxu0 0
        %1037 = vmatprep.subr.bf16.mxu0 0
        %1038 = vmatpush2.bf16.msra.mxu0 0
        %1039 = vmatprep.mubr.bf16.mxu0 0
        %1040 = vmatmul.mubr.bf16.gmra.mxu0 %v1002
        %v1041 = vpop.f32.mrf.mxu0
        %v1042 = vadd.f32 0.0, %v1041
        %v1043 = vpop.f32.mrf.mxu0
        %v1044 = vpop.f32.mrf.mxu0
        %v1045 = vadd.f32 0.0, %v1044
        %v1046 = vpop.f32.mrf.mxu0
        %1047 = vdwg.mxu0
        %v1048 = vadd.f32 %v997, %v1042
        %v1049 = vadd.f32 %v998, %v1045
        %1051 = vset.pattern.permute.xlu0 0
        %1052 = vperm.xlu0 %1051, %v316
        %v1053 = vpop.permute.xlu0 %1052
        %v1056 = vsel %vm852, %v848, 0
        %v1059 = vsel %vm856, %v315, 0
        %1061 = vmatprep.subr.bf16.mxu0 0
        %1062 = vmatpush1.bf16.msra.mxu0 0
        %1063 = vmatprep.subr.bf16.mxu0 0
        %1064 = vmatpush1.bf16.msra.mxu0 0
        %1065 = vmatprep.subr.bf16.mxu0 0
        %1066 = vmatpush1.bf16.msra.mxu0 0
        %1067 = vmatprep.subr.bf16.mxu0 0
        %1068 = vmatpush1.bf16.msra.mxu0 0
        %1069 = vmatprep.subr.bf16.mxu0 0
        %1070 = vmatpush1.bf16.msra.mxu0 0
        %1071 = vmatprep.subr.bf16.mxu0 0
        %1072 = vmatpush1.bf16.msra.mxu0 0
        %1073 = vmatprep.subr.bf16.mxu0 0
        %1074 = vmatpush1.bf16.msra.mxu0 0
        %1075 = vmatprep.subr.bf16.mxu0 0
        %1076 = vmatpush1.bf16.msra.mxu0 %v1059
        %1077 = vmatprep.subr.bf16.mxu0 0
        %1078 = vmatpush2.bf16.msra.mxu0 0
        %1079 = vmatprep.subr.bf16.mxu0 0
        %1080 = vmatpush2.bf16.msra.mxu0 0
        %1081 = vmatprep.subr.bf16.mxu0 0
        %1082 = vmatpush2.bf16.msra.mxu0 0
        %1083 = vmatprep.subr.bf16.mxu0 0
        %1084 = vmatpush2.bf16.msra.mxu0 0
        %1085 = vmatprep.subr.bf16.mxu0 0
        %1086 = vmatpush2.bf16.msra.mxu0 0
        %1087 = vmatprep.subr.bf16.mxu0 0
        %1088 = vmatpush2.bf16.msra.mxu0 0
        %1089 = vmatprep.subr.bf16.mxu0 0
        %1090 = vmatpush2.bf16.msra.mxu0 0
        %1091 = vmatprep.subr.bf16.mxu0 0
        %1092 = vmatpush2.bf16.msra.mxu0 0
        %1093 = vmatprep.mubr.bf16.mxu0 0
        %1094 = vmatmul.mubr.bf16.gmra.mxu0 %v1056
        %v1095 = vpop.f32.mrf.mxu0
        %v1096 = vadd.f32 %v1053, %v1095
        %v1097 = vpop.f32.mrf.mxu0
        %v1098 = vpop.f32.mrf.mxu0
        %v1099 = vpop.f32.mrf.mxu0
        %1100 = vdwg.mxu0
        %v1103 = vunpack.c.l.s4 1966171168
        %v1104 = vunpack.c.0.s8 %v1103
        %v1105 = vlaneseq
        %v1106 = vshrl.u32 %v1105, 7
        %v1107 = vsub.s32 %v1104, %v1106
        %v1108 = vrot.slane %v1096, %v1107
        %v1109 = vcombine.high %v1108, %v1108
        %v1111 = vunpack.c.l.s4 1966171168
        %v1112 = vunpack.c.0.s8 %v1111
        %v1113 = vlaneseq
        %v1114 = vshrl.u32 %v1113, 7
        %v1115 = vsub.s32 %v1112, %v1114
        %v1116 = vrot.slane %v1108, %v1115
        %v1118 = vunpack.c.l.s4 1966171168
        %v1119 = vunpack.c.0.s8 %v1118
        %v1120 = vlaneseq
        %v1121 = vshrl.u32 %v1120, 7
        %v1122 = vsub.s32 %v1119, %v1121
        %v1123 = vrot.slane %v1109, %v1122
        %v1124 = vcombine.high %v1116, %v1116
        %v1125 = vcombine.high %v1123, %v1123
        %v1126 = vlaneseq
        %v1127 = vshrl.u32 %v1126, 7
        %v1128 = vsub.s32 0, %v1127
        %v1129 = vrot.slane %v1116, %v1128
        %v1130 = vlaneseq
        %v1131 = vshrl.u32 %v1130, 7
        %v1132 = vsub.s32 0, %v1131
        %v1133 = vrot.slane %v1123, %v1132
        %v1134 = vlaneseq
        %v1135 = vshrl.u32 %v1134, 7
        %v1136 = vsub.s32 0, %v1135
        %v1137 = vrot.slane %v1124, %v1136
        %v1138 = vlaneseq
        %v1139 = vshrl.u32 %v1138, 7
        %v1140 = vsub.s32 0, %v1139
        %v1141 = vrot.slane %v1125, %v1140
        %v1148 = vcombine.high %v1048, %v1048
        %v1149 = vcombine.high %v1049, %v1049
        %v1152 = vadd.f32 %v1129, %v1048
        %v1153 = vadd.f32 %v1133, %v1148
        %v1154 = vadd.f32 %v1137, %v1049
        %v1155 = vadd.f32 %v1141, %v1149
        %v1160 = vcombine.low %v1152, %v1153
        %v1161 = vcombine.low %v1154, %v1155
        %vm1164 = vcmask 130048
        %1165 = vst.msk [vmem:[#allocation2] sm:$0xff] %vm1164, %v1160
        %1166 = vst.msk [vmem:[#allocation2 + $0x8] sm:$0xff] %vm1164, %v1161
        %v1167 = vld [vmem:[%s6] sm:$0x3]
        %v1168 = vld [vmem:[%s850] sm:$0x3]
        %1170 = vrot.lane.b32.xlu0 %v776, 124
        %v1171 = vpop.permute.xlu0 %1170
        %v1173 = vsel %vm852, %v1171, 0
        %v1176 = vsel %vm856, %v1168, 0
        %1178 = vmatprep.subr.bf16.mxu0 0
        %1179 = vmatpush1.bf16.msra.mxu0 0
        %1180 = vmatprep.subr.bf16.mxu0 0
        %1181 = vmatpush1.bf16.msra.mxu0 0
        %1182 = vmatprep.subr.bf16.mxu0 0
        %1183 = vmatpush1.bf16.msra.mxu0 0
        %1184 = vmatprep.subr.bf16.mxu0 0
        %1185 = vmatpush1.bf16.msra.mxu0 0
        %1186 = vmatprep.subr.bf16.mxu0 0
        %1187 = vmatpush1.bf16.msra.mxu0 0
        %1188 = vmatprep.subr.bf16.mxu0 0
        %1189 = vmatpush1.bf16.msra.mxu0 0
        %1190 = vmatprep.subr.bf16.mxu0 0
        %1191 = vmatpush1.bf16.msra.mxu0 0
        %1192 = vmatprep.subr.bf16.mxu0 0
        %1193 = vmatpush1.bf16.msra.mxu0 %v1176
        %1194 = vmatprep.subr.bf16.mxu0 0
        %1195 = vmatpush2.bf16.msra.mxu0 0
        %1196 = vmatprep.subr.bf16.mxu0 0
        %1197 = vmatpush2.bf16.msra.mxu0 0
        %1198 = vmatprep.subr.bf16.mxu0 0
        %1199 = vmatpush2.bf16.msra.mxu0 0
        %1200 = vmatprep.subr.bf16.mxu0 0
        %1201 = vmatpush2.bf16.msra.mxu0 0
        %1202 = vmatprep.subr.bf16.mxu0 0
        %1203 = vmatpush2.bf16.msra.mxu0 0
        %1204 = vmatprep.subr.bf16.mxu0 0
        %1205 = vmatpush2.bf16.msra.mxu0 0
        %1206 = vmatprep.subr.bf16.mxu0 0
        %1207 = vmatpush2.bf16.msra.mxu0 0
        %1208 = vmatprep.subr.bf16.mxu0 0
        %1209 = vmatpush2.bf16.msra.mxu0 0
        %1210 = vmatprep.mubr.bf16.mxu0 0
        %1211 = vmatmul.mubr.bf16.gmra.mxu0 %v1173
        %v1212 = vpop.f32.mrf.mxu0
        %v1213 = vadd.f32 0.0, %v1212
        %v1214 = vpop.f32.mrf.mxu0
        %v1215 = vpop.f32.mrf.mxu0
        %v1216 = vadd.f32 0.0, %v1215
        %v1217 = vpop.f32.mrf.mxu0
        %1218 = vdwg.mxu0
        %1220 = vrot.lane.b32.xlu0 %v775, 124
        %v1221 = vpop.permute.xlu0 %1220
        %v1223 = vsel %vm852, %v1221, 0
        %v1226 = vsel %vm856, %v1167, 0
        %1228 = vmatprep.subr.bf16.mxu0 0
        %1229 = vmatpush1.bf16.msra.mxu0 0
        %1230 = vmatprep.subr.bf16.mxu0 0
        %1231 = vmatpush1.bf16.msra.mxu0 0
        %1232 = vmatprep.subr.bf16.mxu0 0
        %1233 = vmatpush1.bf16.msra.mxu0 0
        %1234 = vmatprep.subr.bf16.mxu0 0
        %1235 = vmatpush1.bf16.msra.mxu0 0
        %1236 = vmatprep.subr.bf16.mxu0 0
        %1237 = vmatpush1.bf16.msra.mxu0 0
        %1238 = vmatprep.subr.bf16.mxu0 0
        %1239 = vmatpush1.bf16.msra.mxu0 0
        %1240 = vmatprep.subr.bf16.mxu0 0
        %1241 = vmatpush1.bf16.msra.mxu0 0
        %1242 = vmatprep.subr.bf16.mxu0 0
        %1243 = vmatpush1.bf16.msra.mxu0 %v1226
        %1244 = vmatprep.subr.bf16.mxu0 0
        %1245 = vmatpush2.bf16.msra.mxu0 0
        %1246 = vmatprep.subr.bf16.mxu0 0
        %1247 = vmatpush2.bf16.msra.mxu0 0
        %1248 = vmatprep.subr.bf16.mxu0 0
        %1249 = vmatpush2.bf16.msra.mxu0 0
        %1250 = vmatprep.subr.bf16.mxu0 0
        %1251 = vmatpush2.bf16.msra.mxu0 0
        %1252 = vmatprep.subr.bf16.mxu0 0
        %1253 = vmatpush2.bf16.msra.mxu0 0
        %1254 = vmatprep.subr.bf16.mxu0 0
        %1255 = vmatpush2.bf16.msra.mxu0 0
        %1256 = vmatprep.subr.bf16.mxu0 0
        %1257 = vmatpush2.bf16.msra.mxu0 0
        %1258 = vmatprep.subr.bf16.mxu0 0
        %1259 = vmatpush2.bf16.msra.mxu0 0
        %1260 = vmatprep.mubr.bf16.mxu0 0
        %1261 = vmatmul.mubr.bf16.gmra.mxu0 %v1223
        %v1262 = vpop.f32.mrf.mxu0
        %v1263 = vadd.f32 %v1213, %v1262
        %v1264 = vpop.f32.mrf.mxu0
        %v1265 = vpop.f32.mrf.mxu0
        %v1266 = vadd.f32 %v1216, %v1265
        %v1267 = vpop.f32.mrf.mxu0
        %1268 = vdwg.mxu0
        %v1269 = vld [vmem:[%s948] sm:$0x3]
        %1271 = vrot.lane.b32.xlu0 %v777, 124
        %v1272 = vpop.permute.xlu0 %1271
        %v1274 = vsel %vm852, %v1272, 0
        %v1277 = vsel %vm856, %v1269, 0
        %1279 = vmatprep.subr.bf16.mxu0 0
        %1280 = vmatpush1.bf16.msra.mxu0 0
        %1281 = vmatprep.subr.bf16.mxu0 0
        %1282 = vmatpush1.bf16.msra.mxu0 0
        %1283 = vmatprep.subr.bf16.mxu0 0
        %1284 = vmatpush1.bf16.msra.mxu0 0
        %1285 = vmatprep.subr.bf16.mxu0 0
        %1286 = vmatpush1.bf16.msra.mxu0 0
        %1287 = vmatprep.subr.bf16.mxu0 0
        %1288 = vmatpush1.bf16.msra.mxu0 0
        %1289 = vmatprep.subr.bf16.mxu0 0
        %1290 = vmatpush1.bf16.msra.mxu0 0
        %1291 = vmatprep.subr.bf16.mxu0 0
        %1292 = vmatpush1.bf16.msra.mxu0 0
        %1293 = vmatprep.subr.bf16.mxu0 0
        %1294 = vmatpush1.bf16.msra.mxu0 %v1277
        %1295 = vmatprep.subr.bf16.mxu0 0
        %1296 = vmatpush2.bf16.msra.mxu0 0
        %1297 = vmatprep.subr.bf16.mxu0 0
        %1298 = vmatpush2.bf16.msra.mxu0 0
        %1299 = vmatprep.subr.bf16.mxu0 0
        %1300 = vmatpush2.bf16.msra.mxu0 0
        %1301 = vmatprep.subr.bf16.mxu0 0
        %1302 = vmatpush2.bf16.msra.mxu0 0
        %1303 = vmatprep.subr.bf16.mxu0 0
        %1304 = vmatpush2.bf16.msra.mxu0 0
        %1305 = vmatprep.subr.bf16.mxu0 0
        %1306 = vmatpush2.bf16.msra.mxu0 0
        %1307 = vmatprep.subr.bf16.mxu0 0
        %1308 = vmatpush2.bf16.msra.mxu0 0
        %1309 = vmatprep.subr.bf16.mxu0 0
        %1310 = vmatpush2.bf16.msra.mxu0 0
        %1311 = vmatprep.mubr.bf16.mxu0 0
        %1312 = vmatmul.mubr.bf16.gmra.mxu0 %v1274
        %v1313 = vpop.f32.mrf.mxu0
        %v1314 = vadd.f32 0.0, %v1313
        %v1315 = vpop.f32.mrf.mxu0
        %v1316 = vpop.f32.mrf.mxu0
        %v1317 = vadd.f32 0.0, %v1316
        %v1318 = vpop.f32.mrf.mxu0
        %1319 = vdwg.mxu0
        %v1320 = vadd.f32 %v1263, %v1314
        %v1321 = vadd.f32 %v1266, %v1317
        %v1322 = vld [vmem:[%s999] sm:$0x3]
        %1324 = vrot.lane.b32.xlu0 %v778, 124
        %v1325 = vpop.permute.xlu0 %1324
        %v1327 = vsel %vm852, %v1325, 0
        %v1330 = vsel %vm856, %v1322, 0
        %1332 = vmatprep.subr.bf16.mxu0 0
        %1333 = vmatpush1.bf16.msra.mxu0 0
        %1334 = vmatprep.subr.bf16.mxu0 0
        %1335 = vmatpush1.bf16.msra.mxu0 0
        %1336 = vmatprep.subr.bf16.mxu0 0
        %1337 = vmatpush1.bf16.msra.mxu0 0
        %1338 = vmatprep.subr.bf16.mxu0 0
        %1339 = vmatpush1.bf16.msra.mxu0 0
        %1340 = vmatprep.subr.bf16.mxu0 0
        %1341 = vmatpush1.bf16.msra.mxu0 0
        %1342 = vmatprep.subr.bf16.mxu0 0
        %1343 = vmatpush1.bf16.msra.mxu0 0
        %1344 = vmatprep.subr.bf16.mxu0 0
        %1345 = vmatpush1.bf16.msra.mxu0 0
        %1346 = vmatprep.subr.bf16.mxu0 0
        %1347 = vmatpush1.bf16.msra.mxu0 %v1330
        %1348 = vmatprep.subr.bf16.mxu0 0
        %1349 = vmatpush2.bf16.msra.mxu0 0
        %1350 = vmatprep.subr.bf16.mxu0 0
        %1351 = vmatpush2.bf16.msra.mxu0 0
        %1352 = vmatprep.subr.bf16.mxu0 0
        %1353 = vmatpush2.bf16.msra.mxu0 0
        %1354 = vmatprep.subr.bf16.mxu0 0
        %1355 = vmatpush2.bf16.msra.mxu0 0
        %1356 = vmatprep.subr.bf16.mxu0 0
        %1357 = vmatpush2.bf16.msra.mxu0 0
        %1358 = vmatprep.subr.bf16.mxu0 0
        %1359 = vmatpush2.bf16.msra.mxu0 0
        %1360 = vmatprep.subr.bf16.mxu0 0
        %1361 = vmatpush2.bf16.msra.mxu0 0
        %1362 = vmatprep.subr.bf16.mxu0 0
        %1363 = vmatpush2.bf16.msra.mxu0 0
        %1364 = vmatprep.mubr.bf16.mxu0 0
        %1365 = vmatmul.mubr.bf16.gmra.mxu0 %v1327
        %v1366 = vpop.f32.mrf.mxu0
        %v1367 = vadd.f32 0.0, %v1366
        %v1368 = vpop.f32.mrf.mxu0
        %v1369 = vpop.f32.mrf.mxu0
        %v1370 = vadd.f32 0.0, %v1369
        %v1371 = vpop.f32.mrf.mxu0
        %1372 = vdwg.mxu0
        %v1373 = vadd.f32 %v1320, %v1367
        %v1374 = vadd.f32 %v1321, %v1370
        %1376 = vrot.lane.b32.xlu0 %v848, 124
        %v1377 = vpop.permute.xlu0 %1376
        %v1379 = vsel %vm852, %v1377, 0
        %1381 = vmatprep.subr.bf16.mxu0 0
        %1382 = vmatpush1.bf16.msra.mxu0 0
        %1383 = vmatprep.subr.bf16.mxu0 0
        %1384 = vmatpush1.bf16.msra.mxu0 0
        %1385 = vmatprep.subr.bf16.mxu0 0
        %1386 = vmatpush1.bf16.msra.mxu0 0
        %1387 = vmatprep.subr.bf16.mxu0 0
        %1388 = vmatpush1.bf16.msra.mxu0 0
        %1389 = vmatprep.subr.bf16.mxu0 0
        %1390 = vmatpush1.bf16.msra.mxu0 0
        %1391 = vmatprep.subr.bf16.mxu0 0
        %1392 = vmatpush1.bf16.msra.mxu0 0
        %1393 = vmatprep.subr.bf16.mxu0 0
        %1394 = vmatpush1.bf16.msra.mxu0 0
        %1395 = vmatprep.subr.bf16.mxu0 0
        %1396 = vmatpush1.bf16.msra.mxu0 %v1059
        %1397 = vmatprep.subr.bf16.mxu0 0
        %1398 = vmatpush2.bf16.msra.mxu0 0
        %1399 = vmatprep.subr.bf16.mxu0 0
        %1400 = vmatpush2.bf16.msra.mxu0 0
        %1401 = vmatprep.subr.bf16.mxu0 0
        %1402 = vmatpush2.bf16.msra.mxu0 0
        %1403 = vmatprep.subr.bf16.mxu0 0
        %1404 = vmatpush2.bf16.msra.mxu0 0
        %1405 = vmatprep.subr.bf16.mxu0 0
        %1406 = vmatpush2.bf16.msra.mxu0 0
        %1407 = vmatprep.subr.bf16.mxu0 0
        %1408 = vmatpush2.bf16.msra.mxu0 0
        %1409 = vmatprep.subr.bf16.mxu0 0
        %1410 = vmatpush2.bf16.msra.mxu0 0
        %1411 = vmatprep.subr.bf16.mxu0 0
        %1412 = vmatpush2.bf16.msra.mxu0 0
        %1413 = vmatprep.mubr.bf16.mxu0 0
        %1414 = vmatmul.mubr.bf16.gmra.mxu0 %v1379
        %v1415 = vpop.f32.mrf.mxu0
        %v1416 = vadd.f32 %v1053, %v1415
        %v1417 = vpop.f32.mrf.mxu0
        %v1418 = vpop.f32.mrf.mxu0
        %v1419 = vpop.f32.mrf.mxu0
        %1420 = vdwg.mxu0
        %v1423 = vunpack.c.l.s4 1966171168
        %v1424 = vunpack.c.0.s8 %v1423
        %v1425 = vlaneseq
        %v1426 = vshrl.u32 %v1425, 7
        %v1427 = vsub.s32 %v1424, %v1426
        %v1428 = vrot.slane %v1416, %v1427
        %v1429 = vcombine.high %v1428, %v1428
        %v1431 = vunpack.c.l.s4 1966171168
        %v1432 = vunpack.c.0.s8 %v1431
        %v1433 = vlaneseq
        %v1434 = vshrl.u32 %v1433, 7
        %v1435 = vsub.s32 %v1432, %v1434
        %v1436 = vrot.slane %v1428, %v1435
        %v1438 = vunpack.c.l.s4 1966171168
        %v1439 = vunpack.c.0.s8 %v1438
        %v1440 = vlaneseq
        %v1441 = vshrl.u32 %v1440, 7
        %v1442 = vsub.s32 %v1439, %v1441
        %v1443 = vrot.slane %v1429, %v1442
        %v1444 = vcombine.high %v1436, %v1436
        %v1445 = vcombine.high %v1443, %v1443
        %v1446 = vlaneseq
        %v1447 = vshrl.u32 %v1446, 7
        %v1448 = vsub.s32 0, %v1447
        %v1449 = vrot.slane %v1436, %v1448
        %v1450 = vlaneseq
        %v1451 = vshrl.u32 %v1450, 7
        %v1452 = vsub.s32 0, %v1451
        %v1453 = vrot.slane %v1443, %v1452
        %v1454 = vlaneseq
        %v1455 = vshrl.u32 %v1454, 7
        %v1456 = vsub.s32 0, %v1455
        %v1457 = vrot.slane %v1444, %v1456
        %v1458 = vlaneseq
        %v1459 = vshrl.u32 %v1458, 7
        %v1460 = vsub.s32 0, %v1459
        %v1461 = vrot.slane %v1445, %v1460
        %v1468 = vcombine.high %v1373, %v1373
        %v1469 = vcombine.high %v1374, %v1374
        %v1472 = vadd.f32 %v1449, %v1373
        %v1473 = vadd.f32 %v1453, %v1468
        %v1474 = vadd.f32 %v1457, %v1374
        %v1475 = vadd.f32 %v1461, %v1469
        %v1480 = vcombine.low %v1472, %v1473
        %v1481 = vcombine.low %v1474, %v1475
        %s1484 = scalar_lea.vmem [#allocation2], 16
        %1485 = vst.msk [vmem:[%s1484] sm:$0xff] %vm1164, %v1480
        %1486 = vst.msk [vmem:[%s1484 + $0x8] sm:$0xff] %vm1164, %v1481
        %v1487 = vld [vmem:[%s6] sm:$0x3]
        %v1488 = vld [vmem:[%s850] sm:$0x3]
        %1489 = vrot.lane.b32.xlu0 %v776, 120
        %v1490 = vpop.permute.xlu0 %1489
        %v1492 = vsel %vm852, %v1490, 0
        %v1495 = vsel %vm856, %v1488, 0
        %1497 = vmatprep.subr.bf16.mxu0 0
        %1498 = vmatpush1.bf16.msra.mxu0 0
        %1499 = vmatprep.subr.bf16.mxu0 0
        %1500 = vmatpush1.bf16.msra.mxu0 0
        %1501 = vmatprep.subr.bf16.mxu0 0
        %1502 = vmatpush1.bf16.msra.mxu0 0
        %1503 = vmatprep.subr.bf16.mxu0 0
        %1504 = vmatpush1.bf16.msra.mxu0 0
        %1505 = vmatprep.subr.bf16.mxu0 0
        %1506 = vmatpush1.bf16.msra.mxu0 0
        %1507 = vmatprep.subr.bf16.mxu0 0
        %1508 = vmatpush1.bf16.msra.mxu0 0
        %1509 = vmatprep.subr.bf16.mxu0 0
        %1510 = vmatpush1.bf16.msra.mxu0 0
        %1511 = vmatprep.subr.bf16.mxu0 0
        %1512 = vmatpush1.bf16.msra.mxu0 %v1495
        %1513 = vmatprep.subr.bf16.mxu0 0
        %1514 = vmatpush2.bf16.msra.mxu0 0
        %1515 = vmatprep.subr.bf16.mxu0 0
        %1516 = vmatpush2.bf16.msra.mxu0 0
        %1517 = vmatprep.subr.bf16.mxu0 0
        %1518 = vmatpush2.bf16.msra.mxu0 0
        %1519 = vmatprep.subr.bf16.mxu0 0
        %1520 = vmatpush2.bf16.msra.mxu0 0
        %1521 = vmatprep.subr.bf16.mxu0 0
        %1522 = vmatpush2.bf16.msra.mxu0 0
        %1523 = vmatprep.subr.bf16.mxu0 0
        %1524 = vmatpush2.bf16.msra.mxu0 0
        %1525 = vmatprep.subr.bf16.mxu0 0
        %1526 = vmatpush2.bf16.msra.mxu0 0
        %1527 = vmatprep.subr.bf16.mxu0 0
        %1528 = vmatpush2.bf16.msra.mxu0 0
        %1529 = vmatprep.mubr.bf16.mxu0 0
        %1530 = vmatmul.mubr.bf16.gmra.mxu0 %v1492
        %v1531 = vpop.f32.mrf.mxu0
        %v1532 = vadd.f32 0.0, %v1531
        %v1533 = vpop.f32.mrf.mxu0
        %v1534 = vpop.f32.mrf.mxu0
        %v1535 = vadd.f32 0.0, %v1534
        %v1536 = vpop.f32.mrf.mxu0
        %1537 = vdwg.mxu0
        %1538 = vrot.lane.b32.xlu0 %v775, 120
        %v1539 = vpop.permute.xlu0 %1538
        %v1541 = vsel %vm852, %v1539, 0
        %v1544 = vsel %vm856, %v1487, 0
        %1546 = vmatprep.subr.bf16.mxu0 0
        %1547 = vmatpush1.bf16.msra.mxu0 0
        %1548 = vmatprep.subr.bf16.mxu0 0
        %1549 = vmatpush1.bf16.msra.mxu0 0
        %1550 = vmatprep.subr.bf16.mxu0 0
        %1551 = vmatpush1.bf16.msra.mxu0 0
        %1552 = vmatprep.subr.bf16.mxu0 0
        %1553 = vmatpush1.bf16.msra.mxu0 0
        %1554 = vmatprep.subr.bf16.mxu0 0
        %1555 = vmatpush1.bf16.msra.mxu0 0
        %1556 = vmatprep.subr.bf16.mxu0 0
        %1557 = vmatpush1.bf16.msra.mxu0 0
        %1558 = vmatprep.subr.bf16.mxu0 0
        %1559 = vmatpush1.bf16.msra.mxu0 0
        %1560 = vmatprep.subr.bf16.mxu0 0
        %1561 = vmatpush1.bf16.msra.mxu0 %v1544
        %1562 = vmatprep.subr.bf16.mxu0 0
        %1563 = vmatpush2.bf16.msra.mxu0 0
        %1564 = vmatprep.subr.bf16.mxu0 0
        %1565 = vmatpush2.bf16.msra.mxu0 0
        %1566 = vmatprep.subr.bf16.mxu0 0
        %1567 = vmatpush2.bf16.msra.mxu0 0
        %1568 = vmatprep.subr.bf16.mxu0 0
        %1569 = vmatpush2.bf16.msra.mxu0 0
        %1570 = vmatprep.subr.bf16.mxu0 0
        %1571 = vmatpush2.bf16.msra.mxu0 0
        %1572 = vmatprep.subr.bf16.mxu0 0
        %1573 = vmatpush2.bf16.msra.mxu0 0
        %1574 = vmatprep.subr.bf16.mxu0 0
        %1575 = vmatpush2.bf16.msra.mxu0 0
        %1576 = vmatprep.subr.bf16.mxu0 0
        %1577 = vmatpush2.bf16.msra.mxu0 0
        %1578 = vmatprep.mubr.bf16.mxu0 0
        %1579 = vmatmul.mubr.bf16.gmra.mxu0 %v1541
        %v1580 = vpop.f32.mrf.mxu0
        %v1581 = vadd.f32 %v1532, %v1580
        %v1582 = vpop.f32.mrf.mxu0
        %v1583 = vpop.f32.mrf.mxu0
        %v1584 = vadd.f32 %v1535, %v1583
        %v1585 = vpop.f32.mrf.mxu0
        %1586 = vdwg.mxu0
        %v1587 = vld [vmem:[%s948] sm:$0x3]
        %1588 = vrot.lane.b32.xlu0 %v777, 120
        %v1589 = vpop.permute.xlu0 %1588
        %v1591 = vsel %vm852, %v1589, 0
        %v1594 = vsel %vm856, %v1587, 0
        %1596 = vmatprep.subr.bf16.mxu0 0
        %1597 = vmatpush1.bf16.msra.mxu0 0
        %1598 = vmatprep.subr.bf16.mxu0 0
        %1599 = vmatpush1.bf16.msra.mxu0 0
        %1600 = vmatprep.subr.bf16.mxu0 0
        %1601 = vmatpush1.bf16.msra.mxu0 0
        %1602 = vmatprep.subr.bf16.mxu0 0
        %1603 = vmatpush1.bf16.msra.mxu0 0
        %1604 = vmatprep.subr.bf16.mxu0 0
        %1605 = vmatpush1.bf16.msra.mxu0 0
        %1606 = vmatprep.subr.bf16.mxu0 0
        %1607 = vmatpush1.bf16.msra.mxu0 0
        %1608 = vmatprep.subr.bf16.mxu0 0
        %1609 = vmatpush1.bf16.msra.mxu0 0
        %1610 = vmatprep.subr.bf16.mxu0 0
        %1611 = vmatpush1.bf16.msra.mxu0 %v1594
        %1612 = vmatprep.subr.bf16.mxu0 0
        %1613 = vmatpush2.bf16.msra.mxu0 0
        %1614 = vmatprep.subr.bf16.mxu0 0
        %1615 = vmatpush2.bf16.msra.mxu0 0
        %1616 = vmatprep.subr.bf16.mxu0 0
        %1617 = vmatpush2.bf16.msra.mxu0 0
        %1618 = vmatprep.subr.bf16.mxu0 0
        %1619 = vmatpush2.bf16.msra.mxu0 0
        %1620 = vmatprep.subr.bf16.mxu0 0
        %1621 = vmatpush2.bf16.msra.mxu0 0
        %1622 = vmatprep.subr.bf16.mxu0 0
        %1623 = vmatpush2.bf16.msra.mxu0 0
        %1624 = vmatprep.subr.bf16.mxu0 0
        %1625 = vmatpush2.bf16.msra.mxu0 0
        %1626 = vmatprep.subr.bf16.mxu0 0
        %1627 = vmatpush2.bf16.msra.mxu0 0
        %1628 = vmatprep.mubr.bf16.mxu0 0
        %1629 = vmatmul.mubr.bf16.gmra.mxu0 %v1591
        %v1630 = vpop.f32.mrf.mxu0
        %v1631 = vadd.f32 0.0, %v1630
        %v1632 = vpop.f32.mrf.mxu0
        %v1633 = vpop.f32.mrf.mxu0
        %v1634 = vadd.f32 0.0, %v1633
        %v1635 = vpop.f32.mrf.mxu0
        %1636 = vdwg.mxu0
        %v1637 = vadd.f32 %v1581, %v1631
        %v1638 = vadd.f32 %v1584, %v1634
        %v1639 = vld [vmem:[%s999] sm:$0x3]
        %1640 = vrot.lane.b32.xlu0 %v778, 120
        %v1641 = vpop.permute.xlu0 %1640
        %v1643 = vsel %vm852, %v1641, 0
        %v1646 = vsel %vm856, %v1639, 0
        %1648 = vmatprep.subr.bf16.mxu0 0
        %1649 = vmatpush1.bf16.msra.mxu0 0
        %1650 = vmatprep.subr.bf16.mxu0 0
        %1651 = vmatpush1.bf16.msra.mxu0 0
        %1652 = vmatprep.subr.bf16.mxu0 0
        %1653 = vmatpush1.bf16.msra.mxu0 0
        %1654 = vmatprep.subr.bf16.mxu0 0
        %1655 = vmatpush1.bf16.msra.mxu0 0
        %1656 = vmatprep.subr.bf16.mxu0 0
        %1657 = vmatpush1.bf16.msra.mxu0 0
        %1658 = vmatprep.subr.bf16.mxu0 0
        %1659 = vmatpush1.bf16.msra.mxu0 0
        %1660 = vmatprep.subr.bf16.mxu0 0
        %1661 = vmatpush1.bf16.msra.mxu0 0
        %1662 = vmatprep.subr.bf16.mxu0 0
        %1663 = vmatpush1.bf16.msra.mxu0 %v1646
        %1664 = vmatprep.subr.bf16.mxu0 0
        %1665 = vmatpush2.bf16.msra.mxu0 0
        %1666 = vmatprep.subr.bf16.mxu0 0
        %1667 = vmatpush2.bf16.msra.mxu0 0
        %1668 = vmatprep.subr.bf16.mxu0 0
        %1669 = vmatpush2.bf16.msra.mxu0 0
        %1670 = vmatprep.subr.bf16.mxu0 0
        %1671 = vmatpush2.bf16.msra.mxu0 0
        %1672 = vmatprep.subr.bf16.mxu0 0
        %1673 = vmatpush2.bf16.msra.mxu0 0
        %1674 = vmatprep.subr.bf16.mxu0 0
        %1675 = vmatpush2.bf16.msra.mxu0 0
        %1676 = vmatprep.subr.bf16.mxu0 0
        %1677 = vmatpush2.bf16.msra.mxu0 0
        %1678 = vmatprep.subr.bf16.mxu0 0
        %1679 = vmatpush2.bf16.msra.mxu0 0
        %1680 = vmatprep.mubr.bf16.mxu0 0
        %1681 = vmatmul.mubr.bf16.gmra.mxu0 %v1643
        %v1682 = vpop.f32.mrf.mxu0
        %v1683 = vadd.f32 0.0, %v1682
        %v1684 = vpop.f32.mrf.mxu0
        %v1685 = vpop.f32.mrf.mxu0
        %v1686 = vadd.f32 0.0, %v1685
        %v1687 = vpop.f32.mrf.mxu0
        %1688 = vdwg.mxu0
        %v1689 = vadd.f32 %v1637, %v1683
        %v1690 = vadd.f32 %v1638, %v1686
        %1691 = vrot.lane.b32.xlu0 %v848, 120
        %v1692 = vpop.permute.xlu0 %1691
        %v1694 = vsel %vm852, %v1692, 0
        %1696 = vmatprep.subr.bf16.mxu0 0
        %1697 = vmatpush1.bf16.msra.mxu0 0
        %1698 = vmatprep.subr.bf16.mxu0 0
        %1699 = vmatpush1.bf16.msra.mxu0 0
        %1700 = vmatprep.subr.bf16.mxu0 0
        %1701 = vmatpush1.bf16.msra.mxu0 0
        %1702 = vmatprep.subr.bf16.mxu0 0
        %1703 = vmatpush1.bf16.msra.mxu0 0
        %1704 = vmatprep.subr.bf16.mxu0 0
        %1705 = vmatpush1.bf16.msra.mxu0 0
        %1706 = vmatprep.subr.bf16.mxu0 0
        %1707 = vmatpush1.bf16.msra.mxu0 0
        %1708 = vmatprep.subr.bf16.mxu0 0
        %1709 = vmatpush1.bf16.msra.mxu0 0
        %1710 = vmatprep.subr.bf16.mxu0 0
        %1711 = vmatpush1.bf16.msra.mxu0 %v1059
        %1712 = vmatprep.subr.bf16.mxu0 0
        %1713 = vmatpush2.bf16.msra.mxu0 0
        %1714 = vmatprep.subr.bf16.mxu0 0
        %1715 = vmatpush2.bf16.msra.mxu0 0
        %1716 = vmatprep.subr.bf16.mxu0 0
        %1717 = vmatpush2.bf16.msra.mxu0 0
        %1718 = vmatprep.subr.bf16.mxu0 0
        %1719 = vmatpush2.bf16.msra.mxu0 0
        %1720 = vmatprep.subr.bf16.mxu0 0
        %1721 = vmatpush2.bf16.msra.mxu0 0
        %1722 = vmatprep.subr.bf16.mxu0 0
        %1723 = vmatpush2.bf16.msra.mxu0 0
        %1724 = vmatprep.subr.bf16.mxu0 0
        %1725 = vmatpush2.bf16.msra.mxu0 0
        %1726 = vmatprep.subr.bf16.mxu0 0
        %1727 = vmatpush2.bf16.msra.mxu0 0
        %1728 = vmatprep.mubr.bf16.mxu0 0
        %1729 = vmatmul.mubr.bf16.gmra.mxu0 %v1694
        %v1730 = vpop.f32.mrf.mxu0
        %v1731 = vadd.f32 %v1053, %v1730
        %v1732 = vpop.f32.mrf.mxu0
        %v1733 = vpop.f32.mrf.mxu0
        %v1734 = vpop.f32.mrf.mxu0
        %1735 = vdwg.mxu0
        %v1738 = vunpack.c.l.s4 1966171168
        %v1739 = vunpack.c.0.s8 %v1738
        %v1740 = vlaneseq
        %v1741 = vshrl.u32 %v1740, 7
        %v1742 = vsub.s32 %v1739, %v1741
        %v1743 = vrot.slane %v1731, %v1742
        %v1744 = vcombine.high %v1743, %v1743
        %v1746 = vunpack.c.l.s4 1966171168
        %v1747 = vunpack.c.0.s8 %v1746
        %v1748 = vlaneseq
        %v1749 = vshrl.u32 %v1748, 7
        %v1750 = vsub.s32 %v1747, %v1749
        %v1751 = vrot.slane %v1743, %v1750
        %v1753 = vunpack.c.l.s4 1966171168
        %v1754 = vunpack.c.0.s8 %v1753
        %v1755 = vlaneseq
        %v1756 = vshrl.u32 %v1755, 7
        %v1757 = vsub.s32 %v1754, %v1756
        %v1758 = vrot.slane %v1744, %v1757
        %v1759 = vcombine.high %v1751, %v1751
        %v1760 = vcombine.high %v1758, %v1758
        %v1761 = vlaneseq
        %v1762 = vshrl.u32 %v1761, 7
        %v1763 = vsub.s32 0, %v1762
        %v1764 = vrot.slane %v1751, %v1763
        %v1765 = vlaneseq
        %v1766 = vshrl.u32 %v1765, 7
        %v1767 = vsub.s32 0, %v1766
        %v1768 = vrot.slane %v1758, %v1767
        %v1769 = vlaneseq
        %v1770 = vshrl.u32 %v1769, 7
        %v1771 = vsub.s32 0, %v1770
        %v1772 = vrot.slane %v1759, %v1771
        %v1773 = vlaneseq
        %v1774 = vshrl.u32 %v1773, 7
        %v1775 = vsub.s32 0, %v1774
        %v1776 = vrot.slane %v1760, %v1775
        %v1783 = vcombine.high %v1689, %v1689
        %v1784 = vcombine.high %v1690, %v1690
        %v1787 = vadd.f32 %v1764, %v1689
        %v1788 = vadd.f32 %v1768, %v1783
        %v1789 = vadd.f32 %v1772, %v1690
        %v1790 = vadd.f32 %v1776, %v1784
        %v1795 = vcombine.low %v1787, %v1788
        %v1796 = vcombine.low %v1789, %v1790
        %s1799 = scalar_lea.vmem [#allocation2], 32
        %1800 = vst.msk [vmem:[%s1799] sm:$0xff] %vm1164, %v1795
        %1801 = vst.msk [vmem:[%s1799 + $0x8] sm:$0xff] %vm1164, %v1796
        %v1802 = vld [vmem:[%s6] sm:$0x3]
        %v1803 = vld [vmem:[%s850] sm:$0x3]
        %1804 = vrot.lane.b32.xlu0 %v776, 116
        %v1805 = vpop.permute.xlu0 %1804
        %v1807 = vsel %vm852, %v1805, 0
        %v1810 = vsel %vm856, %v1803, 0
        %1812 = vmatprep.subr.bf16.mxu0 0
        %1813 = vmatpush1.bf16.msra.mxu0 0
        %1814 = vmatprep.subr.bf16.mxu0 0
        %1815 = vmatpush1.bf16.msra.mxu0 0
        %1816 = vmatprep.subr.bf16.mxu0 0
        %1817 = vmatpush1.bf16.msra.mxu0 0
        %1818 = vmatprep.subr.bf16.mxu0 0
        %1819 = vmatpush1.bf16.msra.mxu0 0
        %1820 = vmatprep.subr.bf16.mxu0 0
        %1821 = vmatpush1.bf16.msra.mxu0 0
        %1822 = vmatprep.subr.bf16.mxu0 0
        %1823 = vmatpush1.bf16.msra.mxu0 0
        %1824 = vmatprep.subr.bf16.mxu0 0
        %1825 = vmatpush1.bf16.msra.mxu0 0
        %1826 = vmatprep.subr.bf16.mxu0 0
        %1827 = vmatpush1.bf16.msra.mxu0 %v1810
        %1828 = vmatprep.subr.bf16.mxu0 0
        %1829 = vmatpush2.bf16.msra.mxu0 0
        %1830 = vmatprep.subr.bf16.mxu0 0
        %1831 = vmatpush2.bf16.msra.mxu0 0
        %1832 = vmatprep.subr.bf16.mxu0 0
        %1833 = vmatpush2.bf16.msra.mxu0 0
        %1834 = vmatprep.subr.bf16.mxu0 0
        %1835 = vmatpush2.bf16.msra.mxu0 0
        %1836 = vmatprep.subr.bf16.mxu0 0
        %1837 = vmatpush2.bf16.msra.mxu0 0
        %1838 = vmatprep.subr.bf16.mxu0 0
        %1839 = vmatpush2.bf16.msra.mxu0 0
        %1840 = vmatprep.subr.bf16.mxu0 0
        %1841 = vmatpush2.bf16.msra.mxu0 0
        %1842 = vmatprep.subr.bf16.mxu0 0
        %1843 = vmatpush2.bf16.msra.mxu0 0
        %1844 = vmatprep.mubr.bf16.mxu0 0
        %1845 = vmatmul.mubr.bf16.gmra.mxu0 %v1807
        %v1846 = vpop.f32.mrf.mxu0
        %v1847 = vadd.f32 0.0, %v1846
        %v1848 = vpop.f32.mrf.mxu0
        %v1849 = vpop.f32.mrf.mxu0
        %v1850 = vadd.f32 0.0, %v1849
        %v1851 = vpop.f32.mrf.mxu0
        %1852 = vdwg.mxu0
        %1853 = vrot.lane.b32.xlu0 %v775, 116
        %v1854 = vpop.permute.xlu0 %1853
        %v1856 = vsel %vm852, %v1854, 0
        %v1859 = vsel %vm856, %v1802, 0
        %1861 = vmatprep.subr.bf16.mxu0 0
        %1862 = vmatpush1.bf16.msra.mxu0 0
        %1863 = vmatprep.subr.bf16.mxu0 0
        %1864 = vmatpush1.bf16.msra.mxu0 0
        %1865 = vmatprep.subr.bf16.mxu0 0
        %1866 = vmatpush1.bf16.msra.mxu0 0
        %1867 = vmatprep.subr.bf16.mxu0 0
        %1868 = vmatpush1.bf16.msra.mxu0 0
        %1869 = vmatprep.subr.bf16.mxu0 0
        %1870 = vmatpush1.bf16.msra.mxu0 0
        %1871 = vmatprep.subr.bf16.mxu0 0
        %1872 = vmatpush1.bf16.msra.mxu0 0
        %1873 = vmatprep.subr.bf16.mxu0 0
        %1874 = vmatpush1.bf16.msra.mxu0 0
        %1875 = vmatprep.subr.bf16.mxu0 0
        %1876 = vmatpush1.bf16.msra.mxu0 %v1859
        %1877 = vmatprep.subr.bf16.mxu0 0
        %1878 = vmatpush2.bf16.msra.mxu0 0
        %1879 = vmatprep.subr.bf16.mxu0 0
        %1880 = vmatpush2.bf16.msra.mxu0 0
        %1881 = vmatprep.subr.bf16.mxu0 0
        %1882 = vmatpush2.bf16.msra.mxu0 0
        %1883 = vmatprep.subr.bf16.mxu0 0
        %1884 = vmatpush2.bf16.msra.mxu0 0
        %1885 = vmatprep.subr.bf16.mxu0 0
        %1886 = vmatpush2.bf16.msra.mxu0 0
        %1887 = vmatprep.subr.bf16.mxu0 0
        %1888 = vmatpush2.bf16.msra.mxu0 0
        %1889 = vmatprep.subr.bf16.mxu0 0
        %1890 = vmatpush2.bf16.msra.mxu0 0
        %1891 = vmatprep.subr.bf16.mxu0 0
        %1892 = vmatpush2.bf16.msra.mxu0 0
        %1893 = vmatprep.mubr.bf16.mxu0 0
        %1894 = vmatmul.mubr.bf16.gmra.mxu0 %v1856
        %v1895 = vpop.f32.mrf.mxu0
        %v1896 = vadd.f32 %v1847, %v1895
        %v1897 = vpop.f32.mrf.mxu0
        %v1898 = vpop.f32.mrf.mxu0
        %v1899 = vadd.f32 %v1850, %v1898
        %v1900 = vpop.f32.mrf.mxu0
        %1901 = vdwg.mxu0
        %v1902 = vld [vmem:[%s948] sm:$0x3]
        %1903 = vrot.lane.b32.xlu0 %v777, 116
        %v1904 = vpop.permute.xlu0 %1903
        %v1906 = vsel %vm852, %v1904, 0
        %v1909 = vsel %vm856, %v1902, 0
        %1911 = vmatprep.subr.bf16.mxu0 0
        %1912 = vmatpush1.bf16.msra.mxu0 0
        %1913 = vmatprep.subr.bf16.mxu0 0
        %1914 = vmatpush1.bf16.msra.mxu0 0
        %1915 = vmatprep.subr.bf16.mxu0 0
        %1916 = vmatpush1.bf16.msra.mxu0 0
        %1917 = vmatprep.subr.bf16.mxu0 0
        %1918 = vmatpush1.bf16.msra.mxu0 0
        %1919 = vmatprep.subr.bf16.mxu0 0
        %1920 = vmatpush1.bf16.msra.mxu0 0
        %1921 = vmatprep.subr.bf16.mxu0 0
        %1922 = vmatpush1.bf16.msra.mxu0 0
        %1923 = vmatprep.subr.bf16.mxu0 0
        %1924 = vmatpush1.bf16.msra.mxu0 0
        %1925 = vmatprep.subr.bf16.mxu0 0
        %1926 = vmatpush1.bf16.msra.mxu0 %v1909
        %1927 = vmatprep.subr.bf16.mxu0 0
        %1928 = vmatpush2.bf16.msra.mxu0 0
        %1929 = vmatprep.subr.bf16.mxu0 0
        %1930 = vmatpush2.bf16.msra.mxu0 0
        %1931 = vmatprep.subr.bf16.mxu0 0
        %1932 = vmatpush2.bf16.msra.mxu0 0
        %1933 = vmatprep.subr.bf16.mxu0 0
        %1934 = vmatpush2.bf16.msra.mxu0 0
        %1935 = vmatprep.subr.bf16.mxu0 0
        %1936 = vmatpush2.bf16.msra.mxu0 0
        %1937 = vmatprep.subr.bf16.mxu0 0
        %1938 = vmatpush2.bf16.msra.mxu0 0
        %1939 = vmatprep.subr.bf16.mxu0 0
        %1940 = vmatpush2.bf16.msra.mxu0 0
        %1941 = vmatprep.subr.bf16.mxu0 0
        %1942 = vmatpush2.bf16.msra.mxu0 0
        %1943 = vmatprep.mubr.bf16.mxu0 0
        %1944 = vmatmul.mubr.bf16.gmra.mxu0 %v1906
        %v1945 = vpop.f32.mrf.mxu0
        %v1946 = vadd.f32 0.0, %v1945
        %v1947 = vpop.f32.mrf.mxu0
        %v1948 = vpop.f32.mrf.mxu0
        %v1949 = vadd.f32 0.0, %v1948
        %v1950 = vpop.f32.mrf.mxu0
        %1951 = vdwg.mxu0
        %v1952 = vadd.f32 %v1896, %v1946
        %v1953 = vadd.f32 %v1899, %v1949
        %v1954 = vld [vmem:[%s999] sm:$0x3]
        %1955 = vrot.lane.b32.xlu0 %v778, 116
        %v1956 = vpop.permute.xlu0 %1955
        %v1958 = vsel %vm852, %v1956, 0
        %v1961 = vsel %vm856, %v1954, 0
        %1963 = vmatprep.subr.bf16.mxu0 0
        %1964 = vmatpush1.bf16.msra.mxu0 0
        %1965 = vmatprep.subr.bf16.mxu0 0
        %1966 = vmatpush1.bf16.msra.mxu0 0
        %1967 = vmatprep.subr.bf16.mxu0 0
        %1968 = vmatpush1.bf16.msra.mxu0 0
        %1969 = vmatprep.subr.bf16.mxu0 0
        %1970 = vmatpush1.bf16.msra.mxu0 0
        %1971 = vmatprep.subr.bf16.mxu0 0
        %1972 = vmatpush1.bf16.msra.mxu0 0
        %1973 = vmatprep.subr.bf16.mxu0 0
        %1974 = vmatpush1.bf16.msra.mxu0 0
        %1975 = vmatprep.subr.bf16.mxu0 0
        %1976 = vmatpush1.bf16.msra.mxu0 0
        %1977 = vmatprep.subr.bf16.mxu0 0
        %1978 = vmatpush1.bf16.msra.mxu0 %v1961
        %1979 = vmatprep.subr.bf16.mxu0 0
        %1980 = vmatpush2.bf16.msra.mxu0 0
        %1981 = vmatprep.subr.bf16.mxu0 0
        %1982 = vmatpush2.bf16.msra.mxu0 0
        %1983 = vmatprep.subr.bf16.mxu0 0
        %1984 = vmatpush2.bf16.msra.mxu0 0
        %1985 = vmatprep.subr.bf16.mxu0 0
        %1986 = vmatpush2.bf16.msra.mxu0 0
        %1987 = vmatprep.subr.bf16.mxu0 0
        %1988 = vmatpush2.bf16.msra.mxu0 0
        %1989 = vmatprep.subr.bf16.mxu0 0
        %1990 = vmatpush2.bf16.msra.mxu0 0
        %1991 = vmatprep.subr.bf16.mxu0 0
        %1992 = vmatpush2.bf16.msra.mxu0 0
        %1993 = vmatprep.subr.bf16.mxu0 0
        %1994 = vmatpush2.bf16.msra.mxu0 0
        %1995 = vmatprep.mubr.bf16.mxu0 0
        %1996 = vmatmul.mubr.bf16.gmra.mxu0 %v1958
        %v1997 = vpop.f32.mrf.mxu0
        %v1998 = vadd.f32 0.0, %v1997
        %v1999 = vpop.f32.mrf.mxu0
        %v2000 = vpop.f32.mrf.mxu0
        %v2001 = vadd.f32 0.0, %v2000
        %v2002 = vpop.f32.mrf.mxu0
        %2003 = vdwg.mxu0
        %v2004 = vadd.f32 %v1952, %v1998
        %v2005 = vadd.f32 %v1953, %v2001
        %2006 = vrot.lane.b32.xlu0 %v848, 116
        %v2007 = vpop.permute.xlu0 %2006
        %v2009 = vsel %vm852, %v2007, 0
        %2011 = vmatprep.subr.bf16.mxu0 0
        %2012 = vmatpush1.bf16.msra.mxu0 0
        %2013 = vmatprep.subr.bf16.mxu0 0
        %2014 = vmatpush1.bf16.msra.mxu0 0
        %2015 = vmatprep.subr.bf16.mxu0 0
        %2016 = vmatpush1.bf16.msra.mxu0 0
        %2017 = vmatprep.subr.bf16.mxu0 0
        %2018 = vmatpush1.bf16.msra.mxu0 0
        %2019 = vmatprep.subr.bf16.mxu0 0
        %2020 = vmatpush1.bf16.msra.mxu0 0
        %2021 = vmatprep.subr.bf16.mxu0 0
        %2022 = vmatpush1.bf16.msra.mxu0 0
        %2023 = vmatprep.subr.bf16.mxu0 0
        %2024 = vmatpush1.bf16.msra.mxu0 0
        %2025 = vmatprep.subr.bf16.mxu0 0
        %2026 = vmatpush1.bf16.msra.mxu0 %v1059
        %2027 = vmatprep.subr.bf16.mxu0 0
        %2028 = vmatpush2.bf16.msra.mxu0 0
        %2029 = vmatprep.subr.bf16.mxu0 0
        %2030 = vmatpush2.bf16.msra.mxu0 0
        %2031 = vmatprep.subr.bf16.mxu0 0
        %2032 = vmatpush2.bf16.msra.mxu0 0
        %2033 = vmatprep.subr.bf16.mxu0 0
        %2034 = vmatpush2.bf16.msra.mxu0 0
        %2035 = vmatprep.subr.bf16.mxu0 0
        %2036 = vmatpush2.bf16.msra.mxu0 0
        %2037 = vmatprep.subr.bf16.mxu0 0
        %2038 = vmatpush2.bf16.msra.mxu0 0
        %2039 = vmatprep.subr.bf16.mxu0 0
        %2040 = vmatpush2.bf16.msra.mxu0 0
        %2041 = vmatprep.subr.bf16.mxu0 0
        %2042 = vmatpush2.bf16.msra.mxu0 0
        %2043 = vmatprep.mubr.bf16.mxu0 0
        %2044 = vmatmul.mubr.bf16.gmra.mxu0 %v2009
        %v2045 = vpop.f32.mrf.mxu0
        %v2046 = vadd.f32 %v1053, %v2045
        %v2047 = vpop.f32.mrf.mxu0
        %v2048 = vpop.f32.mrf.mxu0
        %v2049 = vpop.f32.mrf.mxu0
        %2050 = vdwg.mxu0
        %v2053 = vunpack.c.l.s4 1966171168
        %v2054 = vunpack.c.0.s8 %v2053
        %v2055 = vlaneseq
        %v2056 = vshrl.u32 %v2055, 7
        %v2057 = vsub.s32 %v2054, %v2056
        %v2058 = vrot.slane %v2046, %v2057
        %v2059 = vcombine.high %v2058, %v2058
        %v2061 = vunpack.c.l.s4 1966171168
        %v2062 = vunpack.c.0.s8 %v2061
        %v2063 = vlaneseq
        %v2064 = vshrl.u32 %v2063, 7
        %v2065 = vsub.s32 %v2062, %v2064
        %v2066 = vrot.slane %v2058, %v2065
        %v2068 = vunpack.c.l.s4 1966171168
        %v2069 = vunpack.c.0.s8 %v2068
        %v2070 = vlaneseq
        %v2071 = vshrl.u32 %v2070, 7
        %v2072 = vsub.s32 %v2069, %v2071
        %v2073 = vrot.slane %v2059, %v2072
        %v2074 = vcombine.high %v2066, %v2066
        %v2075 = vcombine.high %v2073, %v2073
        %v2076 = vlaneseq
        %v2077 = vshrl.u32 %v2076, 7
        %v2078 = vsub.s32 0, %v2077
        %v2079 = vrot.slane %v2066, %v2078
        %v2080 = vlaneseq
        %v2081 = vshrl.u32 %v2080, 7
        %v2082 = vsub.s32 0, %v2081
        %v2083 = vrot.slane %v2073, %v2082
        %v2084 = vlaneseq
        %v2085 = vshrl.u32 %v2084, 7
        %v2086 = vsub.s32 0, %v2085
        %v2087 = vrot.slane %v2074, %v2086
        %v2088 = vlaneseq
        %v2089 = vshrl.u32 %v2088, 7
        %v2090 = vsub.s32 0, %v2089
        %v2091 = vrot.slane %v2075, %v2090
        %v2098 = vcombine.high %v2004, %v2004
        %v2099 = vcombine.high %v2005, %v2005
        %v2102 = vadd.f32 %v2079, %v2004
        %v2103 = vadd.f32 %v2083, %v2098
        %v2104 = vadd.f32 %v2087, %v2005
        %v2105 = vadd.f32 %v2091, %v2099
        %v2110 = vcombine.low %v2102, %v2103
        %v2111 = vcombine.low %v2104, %v2105
        %s2114 = scalar_lea.vmem [#allocation2], 48
        %2115 = vst.msk [vmem:[%s2114] sm:$0xff] %vm1164, %v2110
        %2116 = vst.msk [vmem:[%s2114 + $0x8] sm:$0xff] %vm1164, %v2111
        %v2117 = vld [vmem:[#allocation2] sm:$0xf]
        %v2118 = vld [vmem:[#allocation2 + $0x10] sm:$0xf]
        %v2119 = vld [vmem:[#allocation2 + $0x20] sm:$0xf]
        %v2120 = vld [vmem:[#allocation2 + $0x30] sm:$0xf]
        %v2125 = vcombine.low %v2117, %v2118
        %v2126 = vcombine.low %v2119, %v2120
        %2129 = vst.msk [vmem:[%s295] sm:$0xff] %vm1164, %v2125
        %2130 = vst.msk [vmem:[%s295 + $0x8] sm:$0xff] %vm1164, %v2126
        %v2131 = vld [vmem:[#allocation2 + $0x4] sm:$0xf]
        %v2132 = vld [vmem:[#allocation2 + $0x14] sm:$0xf]
        %v2133 = vld [vmem:[#allocation2 + $0x24] sm:$0xf]
        %v2134 = vld [vmem:[#allocation2 + $0x34] sm:$0xf]
        %v2139 = vcombine.low %v2131, %v2132
        %v2140 = vcombine.low %v2133, %v2134
        %s2143 = scalar_lea.vmem %s295, 16 [#allocation3]
        %2144 = vst.msk [vmem:[%s2143] sm:$0xff] %vm1164, %v2139
        %2145 = vst.msk [vmem:[%s2143 + $0x8] sm:$0xff] %vm1164, %v2140
        %v2146 = vld [vmem:[#allocation2 + $0x8] sm:$0xf]
        %v2147 = vld [vmem:[#allocation2 + $0x18] sm:$0xf]
        %v2148 = vld [vmem:[#allocation2 + $0x28] sm:$0xf]
        %v2149 = vld [vmem:[#allocation2 + $0x38] sm:$0xf]
        %v2154 = vcombine.low %v2146, %v2147
        %v2155 = vcombine.low %v2148, %v2149
        %s2158 = scalar_lea.vmem %s295, 32 [#allocation3]
        %2159 = vst.msk [vmem:[%s2158] sm:$0xff] %vm1164, %v2154
        %2160 = vst.msk [vmem:[%s2158 + $0x8] sm:$0xff] %vm1164, %v2155
        %v2161 = vld [vmem:[#allocation2 + $0xc] sm:$0xf]
        %v2162 = vld [vmem:[#allocation2 + $0x1c] sm:$0xf]
        %v2163 = vld [vmem:[#allocation2 + $0x2c] sm:$0xf]
        %v2164 = vld [vmem:[#allocation2 + $0x3c] sm:$0xf]
        %v2169 = vcombine.low %v2161, %v2162
        %v2170 = vcombine.low %v2163, %v2164
        %s2173 = scalar_lea.vmem %s295, 48 [#allocation3]
        %2174 = vst.msk [vmem:[%s2173] sm:$0xff] %vm1164, %v2169
        %2175 = vst.msk [vmem:[%s2173 + $0x8] sm:$0xff] %vm1164, %v2170
        %s2176 = sand.u32 %s197, 1
        %s2177 = scalar_lea.sflag [#allocation4], %s2176
        %s2178 = sand.u32 %s197, 1
        %s2179 = smul.addr %s2178, 64
        %s2180 = scalar_lea.vmem [#allocation3], %s2179
        // Predicated region
        $region49: #{composed_model_forward.1} parent=47 // pred_check
          %p2181 = pneg %p207
        $region50: #{composed_model_forward.1} parent=47 // pred_check_branch
          %2183 = sbr.rel (%p2181) target = $region52
        $region51: #{composed_model_forward.1} parent=47 // pred_region
          %s2184 = smul.u32 2, %s26
          %s2186 = ssub.s32 1024, 1024
          %2187 = vsyncadd %s2177, %s2186
          %s2188 = smul.addr %s25, 8
          %s2189 = sadd.s32 %s2184, %s2188
          %s2190 = smul.addr %s2189, 128
          %s2191 = scalar_lea.hbm %s7, %s2190
          %s2192 = sshll.u32 %s2180, 4
          %s2193 = int_to_ptr.vmem [resolvable:$true] %s2192
          %2198 = dma.vmem_to_hbm [thread:$0]  %s2193, 1024, %s2191, %s2177, 128, 128, 8
        $region52: #{composed_model_forward.1} parent=47 // pred_fallthru
          _
      $region48: #{composed_model_forward.1} parent=5 // pred_fallthru
        _
      %p2199 = scmp.le.s32.totalorder 2, %s16
      // Predicated region
      $region53: #{composed_model_forward.1} parent=5 // pred_check
        %p2200 = pneg %p2199
      $region54: #{composed_model_forward.1} parent=5 // pred_check_branch
        %2202 = sbr.rel (%p2200) target = $region56
      $region55: #{composed_model_forward.1} parent=5 // pred_region
        %s2203 = ssub.s32 %s16, 2
        // Predicated region
        $region57: #{composed_model_forward.1} parent=55 // pred_check
          %p2204 = pneg %p213
        $region58: #{composed_model_forward.1} parent=55 // pred_check_branch
          %2206 = sbr.rel (%p2204) target = $region60
        $region59: #{composed_model_forward.1} parent=55 // pred_region
          %s2207 = sand.u32 %s198, 1
          %s2208 = scalar_lea.sflag [#allocation4], %s2207
          %s2209 = sand.u32 %s198, 1
          %s2210 = smul.addr %s2209, 64
          %s2211 = scalar_lea.vmem [#allocation3], %s2210
          %2212 = dma.done %s2208, 1024
        $region60: #{composed_model_forward.1} parent=55 // pred_fallthru
          _
      $region56: #{composed_model_forward.1} parent=5 // pred_fallthru
        _
    $region6: #{composed_model_forward.1} parent=1 // loop_footer
      %s20 = sadd.s32 1, %s16
    $region7: #{composed_model_forward.1} parent=1 // loop_footer_branch
      %15 = sbr.rel target = $region3
    $region8: #{composed_model_forward.1} parent=1 // loop_exit
      _
    %2213 = vsyncpa [#allocation4], 1
    %s2214 = scalar_lea.sflag [#allocation4], 1
    %2215 = vsyncpa %s2214, 1

</llo_original>
